<compile_context>
chip_gen: v7x
topology: tpu7x:2x2x1
jax: 0.10.0
libtpu: 0.0.40
codegen_flags: <defaults>
</compile_context>

<pallas_src>
import jax
import jax.numpy as jnp
from jax.experimental import pallas as pl
from jax.experimental.pallas import tpu as pltpu

INPUT_SIZE = 521
HIDDEN_SIZES = [256, 128, 32]
OUTPUT_SIZE = 3
LATENT_SIZE = HIDDEN_SIZES[2]

H1, H2, H3 = HIDDEN_SIZES
K_RAW = INPUT_SIZE + LATENT_SIZE          # 553
K_PAD = 128 * ((K_RAW + 127) // 128)      # 640  (5 x 128 MXU K-passes)
COMBINED_OUT = 128                        # lane-dense fused (out | latent | 0) slab


def _mlp_latent_kernel(xh_ref,
                       w1_ref, b1_ref,
                       w2_ref, b2_ref,
                       w3_ref, b3_ref,
                       w4c_ref, b4c_ref,
                       y_ref):
    # fl1 + relu  (xh already = cat(x, h) zero-padded to K_PAD, bf16)
    a1 = jnp.dot(xh_ref[...], w1_ref[...],
                 preferred_element_type=jnp.float32) + b1_ref[...]
    a1 = jnp.maximum(a1, 0.0)

    # fl2 + relu  (bf16 on the MXU input side only; bias/relu stay f32 — v5e safe)
    a2 = jnp.dot(a1.astype(jnp.bfloat16), w2_ref[...],
                 preferred_element_type=jnp.float32) + b2_ref[...]
    a2 = jnp.maximum(a2, 0.0)

    # fl3 + relu -> latent (f32)
    latent = jnp.dot(a2.astype(jnp.bfloat16), w3_ref[...],
                     preferred_element_type=jnp.float32) + b3_ref[...]
    latent = jnp.maximum(latent, 0.0)

    # Fused fl4 + latent pass-through: W4c is (32, 128) f32 with
    #   cols 0:3   = W4            -> out
    #   cols 3:35  = I_32          -> latent passes through exactly
    #   cols 35:   = 0
    # -> one lane-dense (TB, 128) store instead of a masked 3-wide store.
    y_ref[...] = jnp.dot(latent, w4c_ref[...],
                         preferred_element_type=jnp.float32) + b4c_ref[...]


def _pick_batch_tile(B):
    for tb in (512, 256, 128, 64, 32, 16, 8):
        if B % tb == 0:
            return tb
    return B  # odd/tiny batch: single full-extent block


def net_mlp_latent_forward(x, h, params, block_b=None):
    """out, latent = NetMLPLatent(x, h) in one pipelined Pallas call."""
    w1, b1, w2, b2, w3, b3, w4c, b4c = params
    B = x.shape[0]
    TB = block_b if block_b is not None else _pick_batch_tile(B)
    assert B % TB == 0, "batch must be divisible by the batch tile"

    # cat((x, h), 1), zero-pad features to K_PAD, cast to bf16 for DMA.
    xh = jnp.concatenate([x, h], axis=1)
    xh = jnp.pad(xh, ((0, 0), (0, K_PAD - K_RAW))).astype(jnp.bfloat16)

    grid = (B // TB,)
    const = lambda i: (0, 0)   # weights/biases: VMEM-resident across the grid

    flops = 2 * B * (K_PAD * H1 + H1 * H2 + H2 * H3 + H3 * COMBINED_OUT)
    bytes_accessed = (
        B * K_PAD * 2                                   # xh (bf16)
        + (K_PAD * H1 + H1 * H2 + H2 * H3) * 2          # bf16 weights
        + H3 * COMBINED_OUT * 4                         # fused fl4 weight (f32)
        + (H1 + H2 + H3 + COMBINED_OUT) * 4             # biases (f32)
        + B * COMBINED_OUT * 4                          # output slab (f32)
    )

    y = pl.pallas_call(
        _mlp_latent_kernel,
        out_shape=jax.ShapeDtypeStruct((B, COMBINED_OUT), jnp.float32),
        grid=grid,
        in_specs=[
            pl.BlockSpec((TB, K_PAD), lambda i: (i, 0)),
            pl.BlockSpec((K_PAD, H1), const),
            pl.BlockSpec((1, H1), const),
            pl.BlockSpec((H1, H2), const),
            pl.BlockSpec((1, H2), const),
            pl.BlockSpec((H2, H3), const),
            pl.BlockSpec((1, H3), const),
            pl.BlockSpec((H3, COMBINED_OUT), const),
            pl.BlockSpec((1, COMBINED_OUT), const),
        ],
        out_specs=pl.BlockSpec((TB, COMBINED_OUT), lambda i: (i, 0)),
        compiler_params=pltpu.CompilerParams(
            dimension_semantics=("parallel",),
        ),
        cost_estimate=pl.CostEstimate(
            flops=flops, transcendentals=0, bytes_accessed=bytes_accessed),
    )(xh, w1, b1, w2, b2, w3, b3, w4c, b4c)

    out = y[:, :OUTPUT_SIZE]
    latent = y[:, OUTPUT_SIZE:OUTPUT_SIZE + LATENT_SIZE]
    return out, latent
    # TODO(synk): if this MLP is used as a recurrent cell (latent fed back as h),
    # move the timestep loop in-kernel (grid over T, latent carried in VMEM
    # scratch) so weights are DMA'd once per sequence instead of once per step.


def init_params(key):
    """PyTorch-Linear-style init (uniform +/- 1/sqrt(fan_in)).

    Returns (kernel_params, reference_params):
      kernel_params: bf16/f32 padded layout used by the Pallas kernel
      reference_params: plain f32 (in, out) weights for the pure-JAX reference
    """
    dims = [
        (K_RAW, H1),   # fl1 on cat(x, h)
        (H1, H2),      # fl2
        (H2, H3),      # fl3
        (H3, OUTPUT_SIZE),  # fl4
    ]
    ws, bs = [], []
    for fan_in, fan_out in dims:
        key, kw, kb = jax.random.split(key, 3)
        bound = 1.0 / (fan_in ** 0.5)
        ws.append(jax.random.uniform(kw, (fan_in, fan_out), jnp.float32, -bound, bound))
        bs.append(jax.random.uniform(kb, (1, fan_out), jnp.float32, -bound, bound))
    w1, w2, w3, w4 = ws
    b1, b2, b3, b4 = bs

    # fl1: row-pad to K_PAD (zero rows == zero-padded input features), bf16.
    w1_pad = jnp.zeros((K_PAD, H1), jnp.float32).at[:K_RAW].set(w1).astype(jnp.bfloat16)
    w2_bf = w2.astype(jnp.bfloat16)
    w3_bf = w3.astype(jnp.bfloat16)

    # fl4 fused with latent pass-through into one lane-dense (32, 128) weight.
    w4c = jnp.zeros((H3, COMBINED_OUT), jnp.float32)
    w4c = w4c.at[:, :OUTPUT_SIZE].set(w4)
    w4c = w4c.at[:, OUTPUT_SIZE:OUTPUT_SIZE + LATENT_SIZE].set(jnp.eye(H3, dtype=jnp.float32))
    b4c = jnp.zeros((1, COMBINED_OUT), jnp.float32).at[:, :OUTPUT_SIZE].set(b4)

    kernel_params = (w1_pad, b1, w2_bf, b2, w3_bf, b3, w4c, b4c)
    reference_params = (w1, b1, w2, b2, w3, b3, w4, b4)
    return kernel_params, reference_params


def reference_forward(x, h, ref_params):
    w1, b1, w2, b2, w3, b3, w4, b4 = ref_params
    xh = jnp.concatenate([x, h], axis=1)
    a1 = jax.nn.relu(xh @ w1 + b1)
    a2 = jax.nn.relu(a1 @ w2 + b2)
    latent = jax.nn.relu(a2 @ w3 + b3)
    out = latent @ w4 + b4
    return out, latent


if __name__ == "__main__":
    key = jax.random.PRNGKey(0)
    kp, kx, kh = jax.random.split(key, 3)

    B = 256  # small demo batch; grid = (2,) with TB = 128
    kernel_params, ref_params = init_params(kp)
    x = jax.random.normal(kx, (B, INPUT_SIZE), jnp.float32)
    h = jax.random.normal(kh, (B, LATENT_SIZE), jnp.float32)

    out, latent = net_mlp_latent_forward(x, h, kernel_params)
    out = jax.block_until_ready(out)
    latent = jax.block_until_ready(latent)

    ref_out, ref_latent = reference_forward(x, h, ref_params)
    assert out.shape == (B, OUTPUT_SIZE) and latent.shape == (B, LATENT_SIZE)
    # bf16 weight/activation storage -> loose tolerances vs the f32 reference.
    assert jnp.allclose(out, ref_out, atol=3e-2, rtol=3e-2)
    assert jnp.allclose(latent, ref_latent, atol=3e-2, rtol=3e-2)

    print("KERNEL_OK")
</pallas_src>

<mosaic_0001>
module attributes {stable_mosaic.version = 11 : i64} {
  func.func @_mlp_latent_kernel(%arg0: i32, %arg1: memref<256x640xbf16, #tpu.memory_space<vmem>>, %arg2: memref<640x256xbf16, #tpu.memory_space<vmem>>, %arg3: memref<1x256xf32, #tpu.memory_space<vmem>>, %arg4: memref<256x128xbf16, #tpu.memory_space<vmem>>, %arg5: memref<1x128xf32, #tpu.memory_space<vmem>>, %arg6: memref<128x32xbf16, #tpu.memory_space<vmem>>, %arg7: memref<1x32xf32, #tpu.memory_space<vmem>>, %arg8: memref<32x128xf32, #tpu.memory_space<vmem>>, %arg9: memref<1x128xf32, #tpu.memory_space<vmem>>, %arg10: memref<256x128xf32, #tpu.memory_space<vmem>>) attributes {dimension_semantics = [#tpu.dimension_semantics<parallel>], iteration_bounds = array<i64: 1>, scalar_prefetch = 0 : i64, scratch_operands = 0 : i64, tpu.core_type = #tpu.core_type<tc>, window_params = [{transform_indices = @transform_0, window_bounds = array<i64: 256, 640>}, {pipeline_mode = #tpu.pipeline_mode<synchronous>, transform_indices = @transform_1, window_bounds = array<i64: 640, 256>}, {pipeline_mode = #tpu.pipeline_mode<synchronous>, transform_indices = @transform_2, window_bounds = array<i64: 1, 256>}, {pipeline_mode = #tpu.pipeline_mode<synchronous>, transform_indices = @transform_3, window_bounds = array<i64: 256, 128>}, {pipeline_mode = #tpu.pipeline_mode<synchronous>, transform_indices = @transform_4, window_bounds = array<i64: 1, 128>}, {pipeline_mode = #tpu.pipeline_mode<synchronous>, transform_indices = @transform_5, window_bounds = array<i64: 128, 32>}, {pipeline_mode = #tpu.pipeline_mode<synchronous>, transform_indices = @transform_6, window_bounds = array<i64: 1, 32>}, {pipeline_mode = #tpu.pipeline_mode<synchronous>, transform_indices = @transform_7, window_bounds = array<i64: 32, 128>}, {pipeline_mode = #tpu.pipeline_mode<synchronous>, transform_indices = @transform_8, window_bounds = array<i64: 1, 128>}, {transform_indices = @transform_9, window_bounds = array<i64: 256, 128>}]} {
    %c0 = arith.constant 0 : index
    %c0_0 = arith.constant 0 : index
    %0 = vector.load %arg1[%c0, %c0_0] : memref<256x640xbf16, #tpu.memory_space<vmem>>, vector<256x640xbf16>
    %c0_1 = arith.constant 0 : index
    %c0_2 = arith.constant 0 : index
    %1 = vector.load %arg2[%c0_1, %c0_2] : memref<640x256xbf16, #tpu.memory_space<vmem>>, vector<640x256xbf16>
    %cst = arith.constant dense<0.000000e+00> : vector<256x256xf32>
    %2 = tpu.matmul %0, %1, %cst {dimension_numbers = #tpu.dot_dimension_numbers<[1], [0], [0], [1], [0, 0, 1, 1], [], []>} : vector<256x640xbf16>, vector<640x256xbf16>, vector<256x256xf32> -> vector<256x256xf32>
    %c0_3 = arith.constant 0 : index
    %c0_4 = arith.constant 0 : index
    %3 = vector.load %arg3[%c0_3, %c0_4] : memref<1x256xf32, #tpu.memory_space<vmem>>, vector<1x256xf32>
    %4 = vector.broadcast %3 : vector<1x256xf32> to vector<256x256xf32>
    %5 = arith.addf %2, %4 : vector<256x256xf32>
    %cst_5 = arith.constant 0.000000e+00 : f32
    %6 = vector.broadcast %cst_5 : f32 to vector<256x256xf32>
    %7 = arith.maximumf %5, %6 : vector<256x256xf32>
    %8 = arith.truncf %7 : vector<256x256xf32> to vector<256x256xbf16>
    %c0_6 = arith.constant 0 : index
    %c0_7 = arith.constant 0 : index
    %9 = vector.load %arg4[%c0_6, %c0_7] : memref<256x128xbf16, #tpu.memory_space<vmem>>, vector<256x128xbf16>
    %cst_8 = arith.constant dense<0.000000e+00> : vector<256x128xf32>
    %10 = tpu.matmul %8, %9, %cst_8 {dimension_numbers = #tpu.dot_dimension_numbers<[1], [0], [0], [1], [0, 0, 1, 1], [], []>} : vector<256x256xbf16>, vector<256x128xbf16>, vector<256x128xf32> -> vector<256x128xf32>
    %c0_9 = arith.constant 0 : index
    %c0_10 = arith.constant 0 : index
    %11 = vector.load %arg5[%c0_9, %c0_10] : memref<1x128xf32, #tpu.memory_space<vmem>>, vector<1x128xf32>
    %12 = vector.broadcast %11 : vector<1x128xf32> to vector<256x128xf32>
    %13 = arith.addf %10, %12 : vector<256x128xf32>
    %cst_11 = arith.constant 0.000000e+00 : f32
    %14 = vector.broadcast %cst_11 : f32 to vector<256x128xf32>
    %15 = arith.maximumf %13, %14 : vector<256x128xf32>
    %16 = arith.truncf %15 : vector<256x128xf32> to vector<256x128xbf16>
    %c0_12 = arith.constant 0 : index
    %c0_13 = arith.constant 0 : index
    %17 = vector.load %arg6[%c0_12, %c0_13] : memref<128x32xbf16, #tpu.memory_space<vmem>>, vector<128x32xbf16>
    %cst_14 = arith.constant dense<0.000000e+00> : vector<256x32xf32>
    %18 = tpu.matmul %16, %17, %cst_14 {dimension_numbers = #tpu.dot_dimension_numbers<[1], [0], [0], [1], [0, 0, 1, 1], [], []>} : vector<256x128xbf16>, vector<128x32xbf16>, vector<256x32xf32> -> vector<256x32xf32>
    %c0_15 = arith.constant 0 : index
    %c0_16 = arith.constant 0 : index
    %19 = vector.load %arg7[%c0_15, %c0_16] : memref<1x32xf32, #tpu.memory_space<vmem>>, vector<1x32xf32>
    %20 = vector.broadcast %19 : vector<1x32xf32> to vector<256x32xf32>
    %21 = arith.addf %18, %20 : vector<256x32xf32>
    %cst_17 = arith.constant 0.000000e+00 : f32
    %22 = vector.broadcast %cst_17 : f32 to vector<256x32xf32>
    %23 = arith.maximumf %21, %22 : vector<256x32xf32>
    %c0_18 = arith.constant 0 : index
    %c0_19 = arith.constant 0 : index
    %24 = vector.load %arg8[%c0_18, %c0_19] : memref<32x128xf32, #tpu.memory_space<vmem>>, vector<32x128xf32>
    %cst_20 = arith.constant dense<0.000000e+00> : vector<256x128xf32>
    %25 = tpu.matmul %23, %24, %cst_20 {dimension_numbers = #tpu.dot_dimension_numbers<[1], [0], [0], [1], [0, 0, 1, 1], [], []>} : vector<256x32xf32>, vector<32x128xf32>, vector<256x128xf32> -> vector<256x128xf32>
    %c0_21 = arith.constant 0 : index
    %c0_22 = arith.constant 0 : index
    %26 = vector.load %arg9[%c0_21, %c0_22] : memref<1x128xf32, #tpu.memory_space<vmem>>, vector<1x128xf32>
    %27 = vector.broadcast %26 : vector<1x128xf32> to vector<256x128xf32>
    %28 = arith.addf %25, %27 : vector<256x128xf32>
    %c0_23 = arith.constant 0 : index
    %c0_24 = arith.constant 0 : index
    %29 = vector.load %arg10[%c0_23, %c0_24] : memref<256x128xf32, #tpu.memory_space<vmem>>, vector<256x128xf32>
    tpu.vector_store %arg10[%c0_23, %c0_24], %28 {strides = array<i32>} : memref<256x128xf32, #tpu.memory_space<vmem>>, vector<256x128xf32>,
    return
  }
  func.func @transform_0(%arg0: i32) -> (i32, i32) {
    %c0_i32 = arith.constant 0 : i32
    %c0_i32_0 = arith.constant 0 : i32
    return %arg0, %c0_i32 : i32, i32
  }
  func.func @transform_1(%arg0: i32) -> (i32, i32) {
    %c0_i32 = arith.constant 0 : i32
    %c0_i32_0 = arith.constant 0 : i32
    %c0_i32_1 = arith.constant 0 : i32
    return %c0_i32, %c0_i32_0 : i32, i32
  }
  func.func @transform_2(%arg0: i32) -> (i32, i32) {
    %c0_i32 = arith.constant 0 : i32
    %c0_i32_0 = arith.constant 0 : i32
    %c0_i32_1 = arith.constant 0 : i32
    return %c0_i32, %c0_i32_0 : i32, i32
  }
  func.func @transform_3(%arg0: i32) -> (i32, i32) {
    %c0_i32 = arith.constant 0 : i32
    %c0_i32_0 = arith.constant 0 : i32
    %c0_i32_1 = arith.constant 0 : i32
    return %c0_i32, %c0_i32_0 : i32, i32
  }
  func.func @transform_4(%arg0: i32) -> (i32, i32) {
    %c0_i32 = arith.constant 0 : i32
    %c0_i32_0 = arith.constant 0 : i32
    %c0_i32_1 = arith.constant 0 : i32
    return %c0_i32, %c0_i32_0 : i32, i32
  }
  func.func @transform_5(%arg0: i32) -> (i32, i32) {
    %c0_i32 = arith.constant 0 : i32
    %c0_i32_0 = arith.constant 0 : i32
    %c0_i32_1 = arith.constant 0 : i32
    return %c0_i32, %c0_i32_0 : i32, i32
  }
  func.func @transform_6(%arg0: i32) -> (i32, i32) {
    %c0_i32 = arith.constant 0 : i32
    %c0_i32_0 = arith.constant 0 : i32
    %c0_i32_1 = arith.constant 0 : i32
    return %c0_i32, %c0_i32_0 : i32, i32
  }
  func.func @transform_7(%arg0: i32) -> (i32, i32) {
    %c0_i32 = arith.constant 0 : i32
    %c0_i32_0 = arith.constant 0 : i32
    %c0_i32_1 = arith.constant 0 : i32
    return %c0_i32, %c0_i32_0 : i32, i32
  }
  func.func @transform_8(%arg0: i32) -> (i32, i32) {
    %c0_i32 = arith.constant 0 : i32
    %c0_i32_0 = arith.constant 0 : i32
    %c0_i32_1 = arith.constant 0 : i32
    return %c0_i32, %c0_i32_0 : i32, i32
  }
  func.func @transform_9(%arg0: i32) -> (i32, i32) {
    %c0_i32 = arith.constant 0 : i32
    %c0_i32_0 = arith.constant 0 : i32
    return %arg0, %c0_i32 : i32, i32
  }
}

</mosaic_0001>

<llo_original>
// kernel: tpu_custom_call.1
$region0: #{tpu_custom_call.1}
  #allocation0 [shape = 'u32[]', space=smem, size = 0x4, offset = 0x4, fixed_abs, tag = 'smem constant byte address 0x4 - core index']
  #allocation1 [shape = 'u32[144,128]{1,0:T(1,128)}', space=vmem, size = 0x12000, scoped, tag = 'internal scratch']
  %s0 = inlined_call_operand.hbm [shape: bf16[256,640], index: 0, kind: input, shape index: {}]
  %s1 = inlined_call_operand.hbm [shape: bf16[640,256], index: 1, kind: input, shape index: {}]
  %s2 = inlined_call_operand.vmem [shape: f32[1,256], index: 2, kind: input, shape index: {}]
  %s3 = inlined_call_operand.hbm [shape: bf16[256,128], index: 3, kind: input, shape index: {}]
  %s4 = inlined_call_operand.vmem [shape: f32[1,128], index: 4, kind: input, shape index: {}]
  %s5 = inlined_call_operand.vmem [shape: bf16[128,32], index: 5, kind: input, shape index: {}]
  %s6 = inlined_call_operand.vmem [shape: f32[1,32], index: 6, kind: input, shape index: {}]
  %s7 = inlined_call_operand.vmem [shape: f32[32,128], index: 7, kind: input, shape index: {}]
  %s8 = inlined_call_operand.vmem [shape: f32[1,128], index: 8, kind: input, shape index: {}]
  %s9 = inlined_call_operand.hbm [shape: f32[256,128], index: 9, kind: output, shape index: {}]
  %s10 = sld [smem:[#allocation0]]
  $region58: #{tpu_custom_call.1} parent=0
    _
  %s12 = ssub.s32 1, %s10
  %s13 = scalar_select 0, %s12, %s10
  $region1: #{tpu_custom_call.1} parent=0
    #allocation2 [shape = 'u8[327680]{0}', space=vmem, size = 0x50000, scoped, tag = 'input window, operand 0, single buffered']
    #allocation3 [shape = 's32[1]{0}', space=sflag, size = 0x4, scoped, tag = 'scoped memory for tpu_custom_call.1']
    #allocation4 [shape = 's32[1]{0}', space=sflag, size = 0x4, scoped, tag = 'scoped memory for tpu_custom_call.1']
    #allocation5 [shape = 'u8[327680]{0}', space=vmem, size = 0x50000, scoped, tag = 'input window, operand 1, single buffered']
    #allocation6 [shape = 's32[1]{0}', space=sflag, size = 0x4, scoped, tag = 'scoped memory for tpu_custom_call.1']
    #allocation7 [shape = 'u8[65536]{0}', space=vmem, size = 0x10000, scoped, tag = 'input window, operand 3, single buffered']
    #allocation8 [shape = 'u8[131072]{0}', space=vmem, size = 0x20000, scoped, tag = 'output window, operand 0, single buffered']
    %14 = vsyncpa [#allocation3], 0
    %15 = vsyncpa [#allocation6], 0
    %16 = vsyncpa [#allocation4], 0
    // Predicated region
    $region2: #{tpu_custom_call.1} parent=1 // pred_check
      _
    $region3: #{tpu_custom_call.1} parent=1 // pred_check_branch
      %18 = sbr.rel (0) target = $region5
    $region4: #{tpu_custom_call.1} parent=1 // pred_region
      %s20 = ssub.s32 10240, 10240
      %21 = vsyncadd [#allocation3], %s20
      %s22 = sshll.u32 [#allocation2], 4
      %s23 = int_to_ptr.vmem [resolvable:$true] %s22
      %28 = dma.hbm_to_vmem [thread:$0]  %s0, 10240, %s23, [#allocation3], 320, 320, 20
    $region5: #{tpu_custom_call.1} parent=1 // pred_fallthru
      _
    // Predicated region
    $region6: #{tpu_custom_call.1} parent=1 // pred_check
      _
    $region7: #{tpu_custom_call.1} parent=1 // pred_check_branch
      %30 = sbr.rel (0) target = $region9
    $region8: #{tpu_custom_call.1} parent=1 // pred_region
      %s32 = ssub.s32 10240, 10240
      %33 = vsyncadd [#allocation6], %s32
      %s34 = sshll.u32 [#allocation5], 4
      %s35 = int_to_ptr.vmem [resolvable:$true] %s34
      %40 = dma.hbm_to_vmem [thread:$0]  %s1, 10240, %s35, [#allocation6], 128, 128, 8
    $region9: #{tpu_custom_call.1} parent=1 // pred_fallthru
      _
    // Predicated region
    $region10: #{tpu_custom_call.1} parent=1 // pred_check
      _
    $region11: #{tpu_custom_call.1} parent=1 // pred_check_branch
      %42 = sbr.rel (0) target = $region13
    $region12: #{tpu_custom_call.1} parent=1 // pred_region
      _
    $region13: #{tpu_custom_call.1} parent=1 // pred_fallthru
      _
    // Predicated region
    $region14: #{tpu_custom_call.1} parent=1 // pred_check
      _
    $region15: #{tpu_custom_call.1} parent=1 // pred_check_branch
      %44 = sbr.rel (0) target = $region17
    $region16: #{tpu_custom_call.1} parent=1 // pred_region
      %s46 = ssub.s32 2048, 2048
      %47 = vsyncadd [#allocation6], %s46
      %s48 = sshll.u32 [#allocation7], 4
      %s49 = int_to_ptr.vmem [resolvable:$true] %s48
      %54 = dma.hbm_to_vmem [thread:$0]  %s3, 2048, %s49, [#allocation6], 64, 64, 4
    $region17: #{tpu_custom_call.1} parent=1 // pred_fallthru
      _
    // Predicated region
    $region18: #{tpu_custom_call.1} parent=1 // pred_check
      _
    $region19: #{tpu_custom_call.1} parent=1 // pred_check_branch
      %56 = sbr.rel (0) target = $region21
    $region20: #{tpu_custom_call.1} parent=1 // pred_region
      _
    $region21: #{tpu_custom_call.1} parent=1 // pred_fallthru
      _
    // Predicated region
    $region22: #{tpu_custom_call.1} parent=1 // pred_check
      _
    $region23: #{tpu_custom_call.1} parent=1 // pred_check_branch
      %58 = sbr.rel (0) target = $region25
    $region24: #{tpu_custom_call.1} parent=1 // pred_region
      _
    $region25: #{tpu_custom_call.1} parent=1 // pred_fallthru
      _
    // Predicated region
    $region26: #{tpu_custom_call.1} parent=1 // pred_check
      _
    $region27: #{tpu_custom_call.1} parent=1 // pred_check_branch
      %60 = sbr.rel (0) target = $region29
    $region28: #{tpu_custom_call.1} parent=1 // pred_region
      _
    $region29: #{tpu_custom_call.1} parent=1 // pred_fallthru
      _
    // Predicated region
    $region30: #{tpu_custom_call.1} parent=1 // pred_check
      _
    $region31: #{tpu_custom_call.1} parent=1 // pred_check_branch
      %62 = sbr.rel (0) target = $region33
    $region32: #{tpu_custom_call.1} parent=1 // pred_region
      _
    $region33: #{tpu_custom_call.1} parent=1 // pred_fallthru
      _
    // Predicated region
    $region34: #{tpu_custom_call.1} parent=1 // pred_check
      _
    $region35: #{tpu_custom_call.1} parent=1 // pred_check_branch
      %64 = sbr.rel (0) target = $region37
    $region36: #{tpu_custom_call.1} parent=1 // pred_region
      _
    $region37: #{tpu_custom_call.1} parent=1 // pred_fallthru
      _
    // Predicated region
    $region38: #{tpu_custom_call.1} parent=1 // pred_check
      _
    $region39: #{tpu_custom_call.1} parent=1 // pred_check_branch
      %66 = sbr.rel (0) target = $region41
    $region40: #{tpu_custom_call.1} parent=1 // pred_region
      %67 = dma.done [#allocation3], 10240
    $region41: #{tpu_custom_call.1} parent=1 // pred_fallthru
      _
    // Predicated region
    $region42: #{tpu_custom_call.1} parent=1 // pred_check
      _
    $region43: #{tpu_custom_call.1} parent=1 // pred_check_branch
      %69 = sbr.rel (0) target = $region45
    $region44: #{tpu_custom_call.1} parent=1 // pred_region
      %70 = dma.done [#allocation6], 10240
    $region45: #{tpu_custom_call.1} parent=1 // pred_fallthru
      _
    // Predicated region
    $region46: #{tpu_custom_call.1} parent=1 // pred_check
      _
    $region47: #{tpu_custom_call.1} parent=1 // pred_check_branch
      %72 = sbr.rel (0) target = $region49
    $region48: #{tpu_custom_call.1} parent=1 // pred_region
      %73 = dma.done [#allocation6], 2048
    $region49: #{tpu_custom_call.1} parent=1 // pred_fallthru
      _
    %v75 = vld [vmem:[#allocation2] sm:$0xff]
    %v76 = vld [vmem:[#allocation2 + $0x8] sm:$0xff]
    %v77 = vld [vmem:[#allocation2 + $0x10] sm:$0xf]
    %v78 = vld [vmem:[#allocation2 + $0x14] sm:$0xff]
    %v79 = vld [vmem:[#allocation2 + $0x1c] sm:$0xff]
    %v80 = vld [vmem:[#allocation2 + $0x24] sm:$0xf]
    %v81 = vld [vmem:[#allocation2 + $0x28] sm:$0xff]
    %v82 = vld [vmem:[#allocation2 + $0x30] sm:$0xff]
    %v83 = vld [vmem:[#allocation2 + $0x38] sm:$0xf]
    %v84 = vld [vmem:[#allocation2 + $0x3c] sm:$0xff]
    %v85 = vld [vmem:[#allocation2 + $0x44] sm:$0xff]
    %v86 = vld [vmem:[#allocation2 + $0x4c] sm:$0xf]
    %v87 = vld [vmem:[#allocation2 + $0x50] sm:$0xff]
    %v88 = vld [vmem:[#allocation2 + $0x58] sm:$0xff]
    %v89 = vld [vmem:[#allocation2 + $0x60] sm:$0xf]
    %v90 = vld [vmem:[#allocation2 + $0x64] sm:$0xff]
    %v91 = vld [vmem:[#allocation2 + $0x6c] sm:$0xff]
    %v92 = vld [vmem:[#allocation2 + $0x74] sm:$0xf]
    %v93 = vld [vmem:[#allocation2 + $0x78] sm:$0xff]
    %v94 = vld [vmem:[#allocation2 + $0x80] sm:$0xff]
    %v95 = vld [vmem:[#allocation2 + $0x88] sm:$0xf]
    %v96 = vld [vmem:[#allocation2 + $0x8c] sm:$0xff]
    %v97 = vld [vmem:[#allocation2 + $0x94] sm:$0xff]
    %v98 = vld [vmem:[#allocation2 + $0x9c] sm:$0xf]
    %v99 = vld [vmem:[#allocation2 + $0xa0] sm:$0xff]
    %v100 = vld [vmem:[#allocation2 + $0xa8] sm:$0xff]
    %v101 = vld [vmem:[#allocation2 + $0xb0] sm:$0xf]
    %v102 = vld [vmem:[#allocation2 + $0xb4] sm:$0xff]
    %v103 = vld [vmem:[#allocation2 + $0xbc] sm:$0xff]
    %v104 = vld [vmem:[#allocation2 + $0xc4] sm:$0xf]
    %v105 = vld [vmem:[#allocation2 + $0xc8] sm:$0xff]
    %v106 = vld [vmem:[#allocation2 + $0xd0] sm:$0xff]
    %v107 = vld [vmem:[#allocation2 + $0xd8] sm:$0xf]
    %v108 = vld [vmem:[#allocation2 + $0xdc] sm:$0xff]
    %v109 = vld [vmem:[#allocation2 + $0xe4] sm:$0xff]
    %v110 = vld [vmem:[#allocation2 + $0xec] sm:$0xf]
    %v111 = vld [vmem:[#allocation2 + $0xf0] sm:$0xff]
    %v112 = vld [vmem:[#allocation2 + $0xf8] sm:$0xff]
    %v113 = vld [vmem:[#allocation2 + $0x100] sm:$0xf]
    %v114 = vld [vmem:[#allocation2 + $0x104] sm:$0xff]
    %v115 = vld [vmem:[#allocation2 + $0x10c] sm:$0xff]
    %v116 = vld [vmem:[#allocation2 + $0x114] sm:$0xf]
    %v117 = vld [vmem:[#allocation2 + $0x118] sm:$0xff]
    %v118 = vld [vmem:[#allocation2 + $0x120] sm:$0xff]
    %v119 = vld [vmem:[#allocation2 + $0x128] sm:$0xf]
    %v120 = vld [vmem:[#allocation2 + $0x12c] sm:$0xff]
    %v121 = vld [vmem:[#allocation2 + $0x134] sm:$0xff]
    %v122 = vld [vmem:[#allocation2 + $0x13c] sm:$0xf]
    %v123 = vld [vmem:[#allocation2 + $0x140] sm:$0xff]
    %v124 = vld [vmem:[#allocation2 + $0x148] sm:$0xff]
    %v125 = vld [vmem:[#allocation2 + $0x150] sm:$0xf]
    %v126 = vld [vmem:[#allocation2 + $0x154] sm:$0xff]
    %v127 = vld [vmem:[#allocation2 + $0x15c] sm:$0xff]
    %v128 = vld [vmem:[#allocation2 + $0x164] sm:$0xf]
    %v129 = vld [vmem:[#allocation2 + $0x168] sm:$0xff]
    %v130 = vld [vmem:[#allocation2 + $0x170] sm:$0xff]
    %v131 = vld [vmem:[#allocation2 + $0x178] sm:$0xf]
    %v132 = vld [vmem:[#allocation2 + $0x17c] sm:$0xff]
    %v133 = vld [vmem:[#allocation2 + $0x184] sm:$0xff]
    %v134 = vld [vmem:[#allocation2 + $0x18c] sm:$0xf]
    %v135 = vld [vmem:[#allocation2 + $0x190] sm:$0xff]
    %v136 = vld [vmem:[#allocation2 + $0x198] sm:$0xff]
    %v137 = vld [vmem:[#allocation2 + $0x1a0] sm:$0xf]
    %v138 = vld [vmem:[#allocation2 + $0x1a4] sm:$0xff]
    %v139 = vld [vmem:[#allocation2 + $0x1ac] sm:$0xff]
    %v140 = vld [vmem:[#allocation2 + $0x1b4] sm:$0xf]
    %v141 = vld [vmem:[#allocation2 + $0x1b8] sm:$0xff]
    %v142 = vld [vmem:[#allocation2 + $0x1c0] sm:$0xff]
    %v143 = vld [vmem:[#allocation2 + $0x1c8] sm:$0xf]
    %v144 = vld [vmem:[#allocation2 + $0x1cc] sm:$0xff]
    %v145 = vld [vmem:[#allocation2 + $0x1d4] sm:$0xff]
    %v146 = vld [vmem:[#allocation2 + $0x1dc] sm:$0xf]
    %v147 = vld [vmem:[#allocation2 + $0x1e0] sm:$0xff]
    %v148 = vld [vmem:[#allocation2 + $0x1e8] sm:$0xff]
    %v149 = vld [vmem:[#allocation2 + $0x1f0] sm:$0xf]
    %v150 = vld [vmem:[#allocation2 + $0x1f4] sm:$0xff]
    %v151 = vld [vmem:[#allocation2 + $0x1fc] sm:$0xff]
    %v152 = vld [vmem:[#allocation2 + $0x204] sm:$0xf]
    %v153 = vld [vmem:[#allocation2 + $0x208] sm:$0xff]
    %v154 = vld [vmem:[#allocation2 + $0x210] sm:$0xff]
    %v155 = vld [vmem:[#allocation2 + $0x218] sm:$0xf]
    %v156 = vld [vmem:[#allocation2 + $0x21c] sm:$0xff]
    %v157 = vld [vmem:[#allocation2 + $0x224] sm:$0xff]
    %v158 = vld [vmem:[#allocation2 + $0x22c] sm:$0xf]
    %v159 = vld [vmem:[#allocation2 + $0x230] sm:$0xff]
    %v160 = vld [vmem:[#allocation2 + $0x238] sm:$0xff]
    %v161 = vld [vmem:[#allocation2 + $0x240] sm:$0xf]
    %v162 = vld [vmem:[#allocation2 + $0x244] sm:$0xff]
    %v163 = vld [vmem:[#allocation2 + $0x24c] sm:$0xff]
    %v164 = vld [vmem:[#allocation2 + $0x254] sm:$0xf]
    %v165 = vld [vmem:[#allocation2 + $0x258] sm:$0xff]
    %v166 = vld [vmem:[#allocation2 + $0x260] sm:$0xff]
    %v167 = vld [vmem:[#allocation2 + $0x268] sm:$0xf]
    %v168 = vld [vmem:[#allocation2 + $0x26c] sm:$0xff]
    %v169 = vld [vmem:[#allocation2 + $0x274] sm:$0xff]
    %v170 = vld [vmem:[#allocation2 + $0x27c] sm:$0xf]
    %v171 = vld [vmem:[#allocation5] sm:$0xff]
    %v172 = vld [vmem:[#allocation5 + $0x8] sm:$0xff]
    %v173 = vld [vmem:[#allocation5 + $0x10] sm:$0xff]
    %v174 = vld [vmem:[#allocation5 + $0x18] sm:$0xff]
    %v175 = vld [vmem:[#allocation5 + $0x20] sm:$0xff]
    %v176 = vld [vmem:[#allocation5 + $0x28] sm:$0xff]
    %v177 = vld [vmem:[#allocation5 + $0x30] sm:$0xff]
    %v178 = vld [vmem:[#allocation5 + $0x38] sm:$0xff]
    %v179 = vld [vmem:[#allocation5 + $0x40] sm:$0xff]
    %v180 = vld [vmem:[#allocation5 + $0x48] sm:$0xff]
    %v181 = vld [vmem:[#allocation5 + $0x50] sm:$0xff]
    %v182 = vld [vmem:[#allocation5 + $0x58] sm:$0xff]
    %v183 = vld [vmem:[#allocation5 + $0x60] sm:$0xff]
    %v184 = vld [vmem:[#allocation5 + $0x68] sm:$0xff]
    %v185 = vld [vmem:[#allocation5 + $0x70] sm:$0xff]
    %v186 = vld [vmem:[#allocation5 + $0x78] sm:$0xff]
    %v187 = vld [vmem:[#allocation5 + $0x80] sm:$0xff]
    %v188 = vld [vmem:[#allocation5 + $0x88] sm:$0xff]
    %v189 = vld [vmem:[#allocation5 + $0x90] sm:$0xff]
    %v190 = vld [vmem:[#allocation5 + $0x98] sm:$0xff]
    %v191 = vld [vmem:[#allocation5 + $0xa0] sm:$0xff]
    %v192 = vld [vmem:[#allocation5 + $0xa8] sm:$0xff]
    %v193 = vld [vmem:[#allocation5 + $0xb0] sm:$0xff]
    %v194 = vld [vmem:[#allocation5 + $0xb8] sm:$0xff]
    %v195 = vld [vmem:[#allocation5 + $0xc0] sm:$0xff]
    %v196 = vld [vmem:[#allocation5 + $0xc8] sm:$0xff]
    %v197 = vld [vmem:[#allocation5 + $0xd0] sm:$0xff]
    %v198 = vld [vmem:[#allocation5 + $0xd8] sm:$0xff]
    %v199 = vld [vmem:[#allocation5 + $0xe0] sm:$0xff]
    %v200 = vld [vmem:[#allocation5 + $0xe8] sm:$0xff]
    %v201 = vld [vmem:[#allocation5 + $0xf0] sm:$0xff]
    %v202 = vld [vmem:[#allocation5 + $0xf8] sm:$0xff]
    %v203 = vld [vmem:[#allocation5 + $0x100] sm:$0xff]
    %v204 = vld [vmem:[#allocation5 + $0x108] sm:$0xff]
    %v205 = vld [vmem:[#allocation5 + $0x110] sm:$0xff]
    %v206 = vld [vmem:[#allocation5 + $0x118] sm:$0xff]
    %v207 = vld [vmem:[#allocation5 + $0x120] sm:$0xff]
    %v208 = vld [vmem:[#allocation5 + $0x128] sm:$0xff]
    %v209 = vld [vmem:[#allocation5 + $0x130] sm:$0xff]
    %v210 = vld [vmem:[#allocation5 + $0x138] sm:$0xff]
    %v211 = vld [vmem:[#allocation5 + $0x140] sm:$0xff]
    %v212 = vld [vmem:[#allocation5 + $0x148] sm:$0xff]
    %v213 = vld [vmem:[#allocation5 + $0x150] sm:$0xff]
    %v214 = vld [vmem:[#allocation5 + $0x158] sm:$0xff]
    %v215 = vld [vmem:[#allocation5 + $0x160] sm:$0xff]
    %v216 = vld [vmem:[#allocation5 + $0x168] sm:$0xff]
    %v217 = vld [vmem:[#allocation5 + $0x170] sm:$0xff]
    %v218 = vld [vmem:[#allocation5 + $0x178] sm:$0xff]
    %v219 = vld [vmem:[#allocation5 + $0x180] sm:$0xff]
    %v220 = vld [vmem:[#allocation5 + $0x188] sm:$0xff]
    %v221 = vld [vmem:[#allocation5 + $0x190] sm:$0xff]
    %v222 = vld [vmem:[#allocation5 + $0x198] sm:$0xff]
    %v223 = vld [vmem:[#allocation5 + $0x1a0] sm:$0xff]
    %v224 = vld [vmem:[#allocation5 + $0x1a8] sm:$0xff]
    %v225 = vld [vmem:[#allocation5 + $0x1b0] sm:$0xff]
    %v226 = vld [vmem:[#allocation5 + $0x1b8] sm:$0xff]
    %v227 = vld [vmem:[#allocation5 + $0x1c0] sm:$0xff]
    %v228 = vld [vmem:[#allocation5 + $0x1c8] sm:$0xff]
    %v229 = vld [vmem:[#allocation5 + $0x1d0] sm:$0xff]
    %v230 = vld [vmem:[#allocation5 + $0x1d8] sm:$0xff]
    %v231 = vld [vmem:[#allocation5 + $0x1e0] sm:$0xff]
    %v232 = vld [vmem:[#allocation5 + $0x1e8] sm:$0xff]
    %v233 = vld [vmem:[#allocation5 + $0x1f0] sm:$0xff]
    %v234 = vld [vmem:[#allocation5 + $0x1f8] sm:$0xff]
    %v235 = vld [vmem:[#allocation5 + $0x200] sm:$0xff]
    %v236 = vld [vmem:[#allocation5 + $0x208] sm:$0xff]
    %v237 = vld [vmem:[#allocation5 + $0x210] sm:$0xff]
    %v238 = vld [vmem:[#allocation5 + $0x218] sm:$0xff]
    %v239 = vld [vmem:[#allocation5 + $0x220] sm:$0xff]
    %v240 = vld [vmem:[#allocation5 + $0x228] sm:$0xff]
    %v241 = vld [vmem:[#allocation5 + $0x230] sm:$0xff]
    %v242 = vld [vmem:[#allocation5 + $0x238] sm:$0xff]
    %v243 = vld [vmem:[#allocation5 + $0x240] sm:$0xff]
    %v244 = vld [vmem:[#allocation5 + $0x248] sm:$0xff]
    %v245 = vld [vmem:[#allocation5 + $0x250] sm:$0xff]
    %v246 = vld [vmem:[#allocation5 + $0x258] sm:$0xff]
    %v247 = vld [vmem:[#allocation5 + $0x260] sm:$0xff]
    %v248 = vld [vmem:[#allocation5 + $0x268] sm:$0xff]
    %v249 = vld [vmem:[#allocation5 + $0x270] sm:$0xff]
    %v250 = vld [vmem:[#allocation5 + $0x278] sm:$0xff]
    %v251 = vld [vmem:[%s2] sm:$0x3]
    %v253 = vlaneseq
    %v254 = vshrl.u32 %v253, 7
    %v255 = vsub.s32 0, %v254
    %v256 = vrot.slane %v251, %v255
    %v257 = vlaneseq
    %v258 = vshrl.u32 %v257, 7
    %v259 = vsub.s32 1, %v258
    %v260 = vrot.slane %v251, %v259
    %v359 = vunpack.c.l.b16 %v75
    %v360 = vunpack.c.h.b16 %v75
    %v361 = vunpack.c.l.b16 %v76
    %v362 = vunpack.c.h.b16 %v76
    %v363 = vunpack.c.l.b16 %v77
    %v364 = vunpack.c.l.b16 %v78
    %v365 = vunpack.c.h.b16 %v78
    %v366 = vunpack.c.l.b16 %v79
    %v367 = vunpack.c.h.b16 %v79
    %v368 = vunpack.c.l.b16 %v80
    %v369 = vunpack.c.l.b16 %v81
    %v370 = vunpack.c.h.b16 %v81
    %v371 = vunpack.c.l.b16 %v82
    %v372 = vunpack.c.h.b16 %v82
    %v373 = vunpack.c.l.b16 %v83
    %v374 = vunpack.c.l.b16 %v84
    %v375 = vunpack.c.h.b16 %v84
    %v376 = vunpack.c.l.b16 %v85
    %v377 = vunpack.c.h.b16 %v85
    %v378 = vunpack.c.l.b16 %v86
    %v379 = vunpack.c.l.b16 %v87
    %v380 = vunpack.c.h.b16 %v87
    %v381 = vunpack.c.l.b16 %v88
    %v382 = vunpack.c.h.b16 %v88
    %v383 = vunpack.c.l.b16 %v89
    %v384 = vunpack.c.l.b16 %v90
    %v385 = vunpack.c.h.b16 %v90
    %v386 = vunpack.c.l.b16 %v91
    %v387 = vunpack.c.h.b16 %v91
    %v388 = vunpack.c.l.b16 %v92
    %v389 = vunpack.c.l.b16 %v93
    %v390 = vunpack.c.h.b16 %v93
    %v391 = vunpack.c.l.b16 %v94
    %v392 = vunpack.c.h.b16 %v94
    %v393 = vunpack.c.l.b16 %v95
    %v394 = vunpack.c.l.b16 %v96
    %v395 = vunpack.c.h.b16 %v96
    %v396 = vunpack.c.l.b16 %v97
    %v397 = vunpack.c.h.b16 %v97
    %v398 = vunpack.c.l.b16 %v98
    %v399 = vunpack.c.l.b16 %v99
    %v400 = vunpack.c.h.b16 %v99
    %v401 = vunpack.c.l.b16 %v100
    %v402 = vunpack.c.h.b16 %v100
    %v403 = vunpack.c.l.b16 %v101
    %v404 = vunpack.c.l.b16 %v102
    %v405 = vunpack.c.h.b16 %v102
    %v406 = vunpack.c.l.b16 %v103
    %v407 = vunpack.c.h.b16 %v103
    %v408 = vunpack.c.l.b16 %v104
    %v409 = vunpack.c.l.b16 %v105
    %v410 = vunpack.c.h.b16 %v105
    %v411 = vunpack.c.l.b16 %v106
    %v412 = vunpack.c.h.b16 %v106
    %v413 = vunpack.c.l.b16 %v107
    %v414 = vunpack.c.l.b16 %v108
    %v415 = vunpack.c.h.b16 %v108
    %v416 = vunpack.c.l.b16 %v109
    %v417 = vunpack.c.h.b16 %v109
    %v418 = vunpack.c.l.b16 %v110
    %v419 = vunpack.c.l.b16 %v111
    %v420 = vunpack.c.h.b16 %v111
    %v421 = vunpack.c.l.b16 %v112
    %v422 = vunpack.c.h.b16 %v112
    %v423 = vunpack.c.l.b16 %v113
    %v424 = vunpack.c.l.b16 %v114
    %v425 = vunpack.c.h.b16 %v114
    %v426 = vunpack.c.l.b16 %v115
    %v427 = vunpack.c.h.b16 %v115
    %v428 = vunpack.c.l.b16 %v116
    %v429 = vunpack.c.l.b16 %v117
    %v430 = vunpack.c.h.b16 %v117
    %v431 = vunpack.c.l.b16 %v118
    %v432 = vunpack.c.h.b16 %v118
    %v433 = vunpack.c.l.b16 %v119
    %v434 = vunpack.c.l.b16 %v120
    %v435 = vunpack.c.h.b16 %v120
    %v436 = vunpack.c.l.b16 %v121
    %v437 = vunpack.c.h.b16 %v121
    %v438 = vunpack.c.l.b16 %v122
    %v439 = vunpack.c.l.b16 %v123
    %v440 = vunpack.c.h.b16 %v123
    %v441 = vunpack.c.l.b16 %v124
    %v442 = vunpack.c.h.b16 %v124
    %v443 = vunpack.c.l.b16 %v125
    %v444 = vunpack.c.l.b16 %v126
    %v445 = vunpack.c.h.b16 %v126
    %v446 = vunpack.c.l.b16 %v127
    %v447 = vunpack.c.h.b16 %v127
    %v448 = vunpack.c.l.b16 %v128
    %v449 = vunpack.c.l.b16 %v129
    %v450 = vunpack.c.h.b16 %v129
    %v451 = vunpack.c.l.b16 %v130
    %v452 = vunpack.c.h.b16 %v130
    %v453 = vunpack.c.l.b16 %v131
    %v454 = vunpack.c.l.b16 %v132
    %v455 = vunpack.c.h.b16 %v132
    %v456 = vunpack.c.l.b16 %v133
    %v457 = vunpack.c.h.b16 %v133
    %v458 = vunpack.c.l.b16 %v134
    %v459 = vunpack.c.l.b16 %v135
    %v460 = vunpack.c.h.b16 %v135
    %v461 = vunpack.c.l.b16 %v136
    %v462 = vunpack.c.h.b16 %v136
    %v463 = vunpack.c.l.b16 %v137
    %v464 = vunpack.c.l.b16 %v138
    %v465 = vunpack.c.h.b16 %v138
    %v466 = vunpack.c.l.b16 %v139
    %v467 = vunpack.c.h.b16 %v139
    %v468 = vunpack.c.l.b16 %v140
    %v469 = vunpack.c.l.b16 %v141
    %v470 = vunpack.c.h.b16 %v141
    %v471 = vunpack.c.l.b16 %v142
    %v472 = vunpack.c.h.b16 %v142
    %v473 = vunpack.c.l.b16 %v143
    %v474 = vunpack.c.l.b16 %v144
    %v475 = vunpack.c.h.b16 %v144
    %v476 = vunpack.c.l.b16 %v145
    %v477 = vunpack.c.h.b16 %v145
    %v478 = vunpack.c.l.b16 %v146
    %v479 = vunpack.c.l.b16 %v147
    %v480 = vunpack.c.h.b16 %v147
    %v481 = vunpack.c.l.b16 %v148
    %v482 = vunpack.c.h.b16 %v148
    %v483 = vunpack.c.l.b16 %v149
    %v484 = vunpack.c.l.b16 %v150
    %v485 = vunpack.c.h.b16 %v150
    %v486 = vunpack.c.l.b16 %v151
    %v487 = vunpack.c.h.b16 %v151
    %v488 = vunpack.c.l.b16 %v152
    %v489 = vunpack.c.l.b16 %v153
    %v490 = vunpack.c.h.b16 %v153
    %v491 = vunpack.c.l.b16 %v154
    %v492 = vunpack.c.h.b16 %v154
    %v493 = vunpack.c.l.b16 %v155
    %v494 = vunpack.c.l.b16 %v156
    %v495 = vunpack.c.h.b16 %v156
    %v496 = vunpack.c.l.b16 %v157
    %v497 = vunpack.c.h.b16 %v157
    %v498 = vunpack.c.l.b16 %v158
    %v499 = vunpack.c.l.b16 %v159
    %v500 = vunpack.c.h.b16 %v159
    %v501 = vunpack.c.l.b16 %v160
    %v502 = vunpack.c.h.b16 %v160
    %v503 = vunpack.c.l.b16 %v161
    %v504 = vunpack.c.l.b16 %v162
    %v505 = vunpack.c.h.b16 %v162
    %v506 = vunpack.c.l.b16 %v163
    %v507 = vunpack.c.h.b16 %v163
    %v508 = vunpack.c.l.b16 %v164
    %v509 = vunpack.c.l.b16 %v165
    %v510 = vunpack.c.h.b16 %v165
    %v511 = vunpack.c.l.b16 %v166
    %v512 = vunpack.c.h.b16 %v166
    %v513 = vunpack.c.l.b16 %v167
    %v514 = vunpack.c.l.b16 %v168
    %v515 = vunpack.c.h.b16 %v168
    %v516 = vunpack.c.l.b16 %v169
    %v517 = vunpack.c.h.b16 %v169
    %v518 = vunpack.c.l.b16 %v170
    %v519 = vpack.c.b16 %v364, %v359
    %v520 = vpack.c.b16 %v365, %v360
    %v521 = vpack.c.b16 %v366, %v361
    %v522 = vpack.c.b16 %v367, %v362
    %v523 = vpack.c.b16 %v368, %v363
    %v524 = vpack.c.b16 %v374, %v369
    %v525 = vpack.c.b16 %v375, %v370
    %v526 = vpack.c.b16 %v376, %v371
    %v527 = vpack.c.b16 %v377, %v372
    %v528 = vpack.c.b16 %v378, %v373
    %v529 = vpack.c.b16 %v384, %v379
    %v530 = vpack.c.b16 %v385, %v380
    %v531 = vpack.c.b16 %v386, %v381
    %v532 = vpack.c.b16 %v387, %v382
    %v533 = vpack.c.b16 %v388, %v383
    %v534 = vpack.c.b16 %v394, %v389
    %v535 = vpack.c.b16 %v395, %v390
    %v536 = vpack.c.b16 %v396, %v391
    %v537 = vpack.c.b16 %v397, %v392
    %v538 = vpack.c.b16 %v398, %v393
    %v539 = vpack.c.b16 %v404, %v399
    %v540 = vpack.c.b16 %v405, %v400
    %v541 = vpack.c.b16 %v406, %v401
    %v542 = vpack.c.b16 %v407, %v402
    %v543 = vpack.c.b16 %v408, %v403
    %v544 = vpack.c.b16 %v414, %v409
    %v545 = vpack.c.b16 %v415, %v410
    %v546 = vpack.c.b16 %v416, %v411
    %v547 = vpack.c.b16 %v417, %v412
    %v548 = vpack.c.b16 %v418, %v413
    %v549 = vpack.c.b16 %v424, %v419
    %v550 = vpack.c.b16 %v425, %v420
    %v551 = vpack.c.b16 %v426, %v421
    %v552 = vpack.c.b16 %v427, %v422
    %v553 = vpack.c.b16 %v428, %v423
    %v554 = vpack.c.b16 %v434, %v429
    %v555 = vpack.c.b16 %v435, %v430
    %v556 = vpack.c.b16 %v436, %v431
    %v557 = vpack.c.b16 %v437, %v432
    %v558 = vpack.c.b16 %v438, %v433
    %v559 = vpack.c.b16 %v444, %v439
    %v560 = vpack.c.b16 %v445, %v440
    %v561 = vpack.c.b16 %v446, %v441
    %v562 = vpack.c.b16 %v447, %v442
    %v563 = vpack.c.b16 %v448, %v443
    %v564 = vpack.c.b16 %v454, %v449
    %v565 = vpack.c.b16 %v455, %v450
    %v566 = vpack.c.b16 %v456, %v451
    %v567 = vpack.c.b16 %v457, %v452
    %v568 = vpack.c.b16 %v458, %v453
    %v569 = vpack.c.b16 %v464, %v459
    %v570 = vpack.c.b16 %v465, %v460
    %v571 = vpack.c.b16 %v466, %v461
    %v572 = vpack.c.b16 %v467, %v462
    %v573 = vpack.c.b16 %v468, %v463
    %v574 = vpack.c.b16 %v474, %v469
    %v575 = vpack.c.b16 %v475, %v470
    %v576 = vpack.c.b16 %v476, %v471
    %v577 = vpack.c.b16 %v477, %v472
    %v578 = vpack.c.b16 %v478, %v473
    %v579 = vpack.c.b16 %v484, %v479
    %v580 = vpack.c.b16 %v485, %v480
    %v581 = vpack.c.b16 %v486, %v481
    %v582 = vpack.c.b16 %v487, %v482
    %v583 = vpack.c.b16 %v488, %v483
    %v584 = vpack.c.b16 %v494, %v489
    %v585 = vpack.c.b16 %v495, %v490
    %v586 = vpack.c.b16 %v496, %v491
    %v587 = vpack.c.b16 %v497, %v492
    %v588 = vpack.c.b16 %v498, %v493
    %v589 = vpack.c.b16 %v504, %v499
    %v590 = vpack.c.b16 %v505, %v500
    %v591 = vpack.c.b16 %v506, %v501
    %v592 = vpack.c.b16 %v507, %v502
    %v593 = vpack.c.b16 %v508, %v503
    %v594 = vpack.c.b16 %v514, %v509
    %v595 = vpack.c.b16 %v515, %v510
    %v596 = vpack.c.b16 %v516, %v511
    %v597 = vpack.c.b16 %v517, %v512
    %v598 = vpack.c.b16 %v518, %v513
    %v759 = vunpack.c.l.b16 %v171
    %v760 = vunpack.c.h.b16 %v171
    %v761 = vunpack.c.l.b16 %v172
    %v762 = vunpack.c.h.b16 %v172
    %v763 = vunpack.c.l.b16 %v173
    %v764 = vunpack.c.h.b16 %v173
    %v765 = vunpack.c.l.b16 %v174
    %v766 = vunpack.c.h.b16 %v174
    %v767 = vunpack.c.l.b16 %v175
    %v768 = vunpack.c.h.b16 %v175
    %v769 = vunpack.c.l.b16 %v176
    %v770 = vunpack.c.h.b16 %v176
    %v771 = vunpack.c.l.b16 %v177
    %v772 = vunpack.c.h.b16 %v177
    %v773 = vunpack.c.l.b16 %v178
    %v774 = vunpack.c.h.b16 %v178
    %v775 = vunpack.c.l.b16 %v179
    %v776 = vunpack.c.h.b16 %v179
    %v777 = vunpack.c.l.b16 %v180
    %v778 = vunpack.c.h.b16 %v180
    %v779 = vunpack.c.l.b16 %v181
    %v780 = vunpack.c.h.b16 %v181
    %v781 = vunpack.c.l.b16 %v182
    %v782 = vunpack.c.h.b16 %v182
    %v783 = vunpack.c.l.b16 %v183
    %v784 = vunpack.c.h.b16 %v183
    %v785 = vunpack.c.l.b16 %v184
    %v786 = vunpack.c.h.b16 %v184
    %v787 = vunpack.c.l.b16 %v185
    %v788 = vunpack.c.h.b16 %v185
    %v789 = vunpack.c.l.b16 %v186
    %v790 = vunpack.c.h.b16 %v186
    %v791 = vunpack.c.l.b16 %v187
    %v792 = vunpack.c.h.b16 %v187
    %v793 = vunpack.c.l.b16 %v188
    %v794 = vunpack.c.h.b16 %v188
    %v795 = vunpack.c.l.b16 %v189
    %v796 = vunpack.c.h.b16 %v189
    %v797 = vunpack.c.l.b16 %v190
    %v798 = vunpack.c.h.b16 %v190
    %v799 = vunpack.c.l.b16 %v191
    %v800 = vunpack.c.h.b16 %v191
    %v801 = vunpack.c.l.b16 %v192
    %v802 = vunpack.c.h.b16 %v192
    %v803 = vunpack.c.l.b16 %v193
    %v804 = vunpack.c.h.b16 %v193
    %v805 = vunpack.c.l.b16 %v194
    %v806 = vunpack.c.h.b16 %v194
    %v807 = vunpack.c.l.b16 %v195
    %v808 = vunpack.c.h.b16 %v195
    %v809 = vunpack.c.l.b16 %v196
    %v810 = vunpack.c.h.b16 %v196
    %v811 = vunpack.c.l.b16 %v197
    %v812 = vunpack.c.h.b16 %v197
    %v813 = vunpack.c.l.b16 %v198
    %v814 = vunpack.c.h.b16 %v198
    %v815 = vunpack.c.l.b16 %v199
    %v816 = vunpack.c.h.b16 %v199
    %v817 = vunpack.c.l.b16 %v200
    %v818 = vunpack.c.h.b16 %v200
    %v819 = vunpack.c.l.b16 %v201
    %v820 = vunpack.c.h.b16 %v201
    %v821 = vunpack.c.l.b16 %v202
    %v822 = vunpack.c.h.b16 %v202
    %v823 = vunpack.c.l.b16 %v203
    %v824 = vunpack.c.h.b16 %v203
    %v825 = vunpack.c.l.b16 %v204
    %v826 = vunpack.c.h.b16 %v204
    %v827 = vunpack.c.l.b16 %v205
    %v828 = vunpack.c.h.b16 %v205
    %v829 = vunpack.c.l.b16 %v206
    %v830 = vunpack.c.h.b16 %v206
    %v831 = vunpack.c.l.b16 %v207
    %v832 = vunpack.c.h.b16 %v207
    %v833 = vunpack.c.l.b16 %v208
    %v834 = vunpack.c.h.b16 %v208
    %v835 = vunpack.c.l.b16 %v209
    %v836 = vunpack.c.h.b16 %v209
    %v837 = vunpack.c.l.b16 %v210
    %v838 = vunpack.c.h.b16 %v210
    %v839 = vunpack.c.l.b16 %v211
    %v840 = vunpack.c.h.b16 %v211
    %v841 = vunpack.c.l.b16 %v212
    %v842 = vunpack.c.h.b16 %v212
    %v843 = vunpack.c.l.b16 %v213
    %v844 = vunpack.c.h.b16 %v213
    %v845 = vunpack.c.l.b16 %v214
    %v846 = vunpack.c.h.b16 %v214
    %v847 = vunpack.c.l.b16 %v215
    %v848 = vunpack.c.h.b16 %v215
    %v849 = vunpack.c.l.b16 %v216
    %v850 = vunpack.c.h.b16 %v216
    %v851 = vunpack.c.l.b16 %v217
    %v852 = vunpack.c.h.b16 %v217
    %v853 = vunpack.c.l.b16 %v218
    %v854 = vunpack.c.h.b16 %v218
    %v855 = vunpack.c.l.b16 %v219
    %v856 = vunpack.c.h.b16 %v219
    %v857 = vunpack.c.l.b16 %v220
    %v858 = vunpack.c.h.b16 %v220
    %v859 = vunpack.c.l.b16 %v221
    %v860 = vunpack.c.h.b16 %v221
    %v861 = vunpack.c.l.b16 %v222
    %v862 = vunpack.c.h.b16 %v222
    %v863 = vunpack.c.l.b16 %v223
    %v864 = vunpack.c.h.b16 %v223
    %v865 = vunpack.c.l.b16 %v224
    %v866 = vunpack.c.h.b16 %v224
    %v867 = vunpack.c.l.b16 %v225
    %v868 = vunpack.c.h.b16 %v225
    %v869 = vunpack.c.l.b16 %v226
    %v870 = vunpack.c.h.b16 %v226
    %v871 = vunpack.c.l.b16 %v227
    %v872 = vunpack.c.h.b16 %v227
    %v873 = vunpack.c.l.b16 %v228
    %v874 = vunpack.c.h.b16 %v228
    %v875 = vunpack.c.l.b16 %v229
    %v876 = vunpack.c.h.b16 %v229
    %v877 = vunpack.c.l.b16 %v230
    %v878 = vunpack.c.h.b16 %v230
    %v879 = vunpack.c.l.b16 %v231
    %v880 = vunpack.c.h.b16 %v231
    %v881 = vunpack.c.l.b16 %v232
    %v882 = vunpack.c.h.b16 %v232
    %v883 = vunpack.c.l.b16 %v233
    %v884 = vunpack.c.h.b16 %v233
    %v885 = vunpack.c.l.b16 %v234
    %v886 = vunpack.c.h.b16 %v234
    %v887 = vunpack.c.l.b16 %v235
    %v888 = vunpack.c.h.b16 %v235
    %v889 = vunpack.c.l.b16 %v236
    %v890 = vunpack.c.h.b16 %v236
    %v891 = vunpack.c.l.b16 %v237
    %v892 = vunpack.c.h.b16 %v237
    %v893 = vunpack.c.l.b16 %v238
    %v894 = vunpack.c.h.b16 %v238
    %v895 = vunpack.c.l.b16 %v239
    %v896 = vunpack.c.h.b16 %v239
    %v897 = vunpack.c.l.b16 %v240
    %v898 = vunpack.c.h.b16 %v240
    %v899 = vunpack.c.l.b16 %v241
    %v900 = vunpack.c.h.b16 %v241
    %v901 = vunpack.c.l.b16 %v242
    %v902 = vunpack.c.h.b16 %v242
    %v903 = vunpack.c.l.b16 %v243
    %v904 = vunpack.c.h.b16 %v243
    %v905 = vunpack.c.l.b16 %v244
    %v906 = vunpack.c.h.b16 %v244
    %v907 = vunpack.c.l.b16 %v245
    %v908 = vunpack.c.h.b16 %v245
    %v909 = vunpack.c.l.b16 %v246
    %v910 = vunpack.c.h.b16 %v246
    %v911 = vunpack.c.l.b16 %v247
    %v912 = vunpack.c.h.b16 %v247
    %v913 = vunpack.c.l.b16 %v248
    %v914 = vunpack.c.h.b16 %v248
    %v915 = vunpack.c.l.b16 %v249
    %v916 = vunpack.c.h.b16 %v249
    %v917 = vunpack.c.l.b16 %v250
    %v918 = vunpack.c.h.b16 %v250
    %v919 = vpack.c.b16 %v761, %v759
    %v920 = vpack.c.b16 %v762, %v760
    %v921 = vpack.c.b16 %v765, %v763
    %v922 = vpack.c.b16 %v766, %v764
    %v923 = vpack.c.b16 %v769, %v767
    %v924 = vpack.c.b16 %v770, %v768
    %v925 = vpack.c.b16 %v773, %v771
    %v926 = vpack.c.b16 %v774, %v772
    %v927 = vpack.c.b16 %v777, %v775
    %v928 = vpack.c.b16 %v778, %v776
    %v929 = vpack.c.b16 %v781, %v779
    %v930 = vpack.c.b16 %v782, %v780
    %v931 = vpack.c.b16 %v785, %v783
    %v932 = vpack.c.b16 %v786, %v784
    %v933 = vpack.c.b16 %v789, %v787
    %v934 = vpack.c.b16 %v790, %v788
    %v935 = vpack.c.b16 %v793, %v791
    %v936 = vpack.c.b16 %v794, %v792
    %v937 = vpack.c.b16 %v797, %v795
    %v938 = vpack.c.b16 %v798, %v796
    %v939 = vpack.c.b16 %v801, %v799
    %v940 = vpack.c.b16 %v802, %v800
    %v941 = vpack.c.b16 %v805, %v803
    %v942 = vpack.c.b16 %v806, %v804
    %v943 = vpack.c.b16 %v809, %v807
    %v944 = vpack.c.b16 %v810, %v808
    %v945 = vpack.c.b16 %v813, %v811
    %v946 = vpack.c.b16 %v814, %v812
    %v947 = vpack.c.b16 %v817, %v815
    %v948 = vpack.c.b16 %v818, %v816
    %v949 = vpack.c.b16 %v821, %v819
    %v950 = vpack.c.b16 %v822, %v820
    %v951 = vpack.c.b16 %v825, %v823
    %v952 = vpack.c.b16 %v826, %v824
    %v953 = vpack.c.b16 %v829, %v827
    %v954 = vpack.c.b16 %v830, %v828
    %v955 = vpack.c.b16 %v833, %v831
    %v956 = vpack.c.b16 %v834, %v832
    %v957 = vpack.c.b16 %v837, %v835
    %v958 = vpack.c.b16 %v838, %v836
    %v959 = vpack.c.b16 %v841, %v839
    %v960 = vpack.c.b16 %v842, %v840
    %v961 = vpack.c.b16 %v845, %v843
    %v962 = vpack.c.b16 %v846, %v844
    %v963 = vpack.c.b16 %v849, %v847
    %v964 = vpack.c.b16 %v850, %v848
    %v965 = vpack.c.b16 %v853, %v851
    %v966 = vpack.c.b16 %v854, %v852
    %v967 = vpack.c.b16 %v857, %v855
    %v968 = vpack.c.b16 %v858, %v856
    %v969 = vpack.c.b16 %v861, %v859
    %v970 = vpack.c.b16 %v862, %v860
    %v971 = vpack.c.b16 %v865, %v863
    %v972 = vpack.c.b16 %v866, %v864
    %v973 = vpack.c.b16 %v869, %v867
    %v974 = vpack.c.b16 %v870, %v868
    %v975 = vpack.c.b16 %v873, %v871
    %v976 = vpack.c.b16 %v874, %v872
    %v977 = vpack.c.b16 %v877, %v875
    %v978 = vpack.c.b16 %v878, %v876
    %v979 = vpack.c.b16 %v881, %v879
    %v980 = vpack.c.b16 %v882, %v880
    %v981 = vpack.c.b16 %v885, %v883
    %v982 = vpack.c.b16 %v886, %v884
    %v983 = vpack.c.b16 %v889, %v887
    %v984 = vpack.c.b16 %v890, %v888
    %v985 = vpack.c.b16 %v893, %v891
    %v986 = vpack.c.b16 %v894, %v892
    %v987 = vpack.c.b16 %v897, %v895
    %v988 = vpack.c.b16 %v898, %v896
    %v989 = vpack.c.b16 %v901, %v899
    %v990 = vpack.c.b16 %v902, %v900
    %v991 = vpack.c.b16 %v905, %v903
    %v992 = vpack.c.b16 %v906, %v904
    %v993 = vpack.c.b16 %v909, %v907
    %v994 = vpack.c.b16 %v910, %v908
    %v995 = vpack.c.b16 %v913, %v911
    %v996 = vpack.c.b16 %v914, %v912
    %v997 = vpack.c.b16 %v917, %v915
    %v998 = vpack.c.b16 %v918, %v916
    %1079 = vmatprep.subr.bf16.mxu0 %v920
    %1080 = vmatpush1.bf16.msra.mxu0 %v919
    %1081 = vmatprep.subr.bf16.mxu0 %v922
    %1082 = vmatpush1.bf16.msra.mxu0 %v921
    %1083 = vmatprep.subr.bf16.mxu0 %v924
    %1084 = vmatpush1.bf16.msra.mxu0 %v923
    %1085 = vmatprep.subr.bf16.mxu0 %v926
    %1086 = vmatpush1.bf16.msra.mxu0 %v925
    %1087 = vmatprep.subr.bf16.mxu0 %v928
    %1088 = vmatpush1.bf16.msra.mxu0 %v927
    %1089 = vmatprep.subr.bf16.mxu0 %v930
    %1090 = vmatpush1.bf16.msra.mxu0 %v929
    %1091 = vmatprep.subr.bf16.mxu0 %v932
    %1092 = vmatpush1.bf16.msra.mxu0 %v931
    %1093 = vmatprep.subr.bf16.mxu0 %v934
    %1094 = vmatpush1.bf16.msra.mxu0 %v933
    %1095 = vmatprep.subr.bf16.mxu0 %v936
    %1096 = vmatpush1.bf16.msra.mxu0 %v935
    %1097 = vmatprep.subr.bf16.mxu0 %v938
    %1098 = vmatpush1.bf16.msra.mxu0 %v937
    %1099 = vmatprep.subr.bf16.mxu0 %v940
    %1100 = vmatpush1.bf16.msra.mxu0 %v939
    %1101 = vmatprep.subr.bf16.mxu0 %v942
    %1102 = vmatpush1.bf16.msra.mxu0 %v941
    %1103 = vmatprep.subr.bf16.mxu0 %v944
    %1104 = vmatpush1.bf16.msra.mxu0 %v943
    %1105 = vmatprep.subr.bf16.mxu0 %v946
    %1106 = vmatpush1.bf16.msra.mxu0 %v945
    %1107 = vmatprep.subr.bf16.mxu0 %v948
    %1108 = vmatpush1.bf16.msra.mxu0 %v947
    %1109 = vmatprep.subr.bf16.mxu0 %v950
    %1110 = vmatpush1.bf16.msra.mxu0 %v949
    %1111 = vmatprep.mubr.bf16.mxu0 %v520
    %1112 = vmatmul.mubr.bf16.gmra.mrb[0].mxu0 %v519
    %v1113 = vpop.f32.mrb[0].mxu0
    %v1114 = vadd.f32 %v256, %v1113
    %v1115 = vpop.f32.mrb[0].mxu0
    %v1116 = vadd.f32 %v260, %v1115
    %v1117 = vpop.f32.mrb[0].mxu0
    %v1118 = vadd.f32 %v256, %v1117
    %v1119 = vpop.f32.mrb[0].mxu0
    %v1120 = vadd.f32 %v260, %v1119
    %1121 = vmatprep.mubr.bf16.mxu0 %v525
    %1122 = vmatmul.mubr.bf16.gmra.mrb[0].mxu0 %v524
    %v1123 = vpop.f32.mrb[0].mxu0
    %v1124 = vadd.f32 %v256, %v1123
    %v1125 = vpop.f32.mrb[0].mxu0
    %v1126 = vadd.f32 %v260, %v1125
    %v1127 = vpop.f32.mrb[0].mxu0
    %v1128 = vadd.f32 %v256, %v1127
    %v1129 = vpop.f32.mrb[0].mxu0
    %v1130 = vadd.f32 %v260, %v1129
    %1131 = vmatprep.mubr.bf16.mxu0 %v530
    %1132 = vmatmul.mubr.bf16.gmra.mrb[0].mxu0 %v529
    %v1133 = vpop.f32.mrb[0].mxu0
    %v1134 = vadd.f32 %v256, %v1133
    %v1135 = vpop.f32.mrb[0].mxu0
    %v1136 = vadd.f32 %v260, %v1135
    %v1137 = vpop.f32.mrb[0].mxu0
    %v1138 = vadd.f32 %v256, %v1137
    %v1139 = vpop.f32.mrb[0].mxu0
    %v1140 = vadd.f32 %v260, %v1139
    %1141 = vmatprep.mubr.bf16.mxu0 %v535
    %1142 = vmatmul.mubr.bf16.gmra.mrb[0].mxu0 %v534
    %v1143 = vpop.f32.mrb[0].mxu0
    %v1144 = vadd.f32 %v256, %v1143
    %v1145 = vpop.f32.mrb[0].mxu0
    %v1146 = vadd.f32 %v260, %v1145
    %v1147 = vpop.f32.mrb[0].mxu0
    %v1148 = vadd.f32 %v256, %v1147
    %v1149 = vpop.f32.mrb[0].mxu0
    %v1150 = vadd.f32 %v260, %v1149
    %1151 = vmatprep.mubr.bf16.mxu0 %v540
    %1152 = vmatmul.mubr.bf16.gmra.mrb[0].mxu0 %v539
    %v1153 = vpop.f32.mrb[0].mxu0
    %v1154 = vadd.f32 %v256, %v1153
    %v1155 = vpop.f32.mrb[0].mxu0
    %v1156 = vadd.f32 %v260, %v1155
    %v1157 = vpop.f32.mrb[0].mxu0
    %v1158 = vadd.f32 %v256, %v1157
    %v1159 = vpop.f32.mrb[0].mxu0
    %v1160 = vadd.f32 %v260, %v1159
    %1161 = vmatprep.mubr.bf16.mxu0 %v545
    %1162 = vmatmul.mubr.bf16.gmra.mrb[0].mxu0 %v544
    %v1163 = vpop.f32.mrb[0].mxu0
    %v1164 = vadd.f32 %v256, %v1163
    %v1165 = vpop.f32.mrb[0].mxu0
    %v1166 = vadd.f32 %v260, %v1165
    %v1167 = vpop.f32.mrb[0].mxu0
    %v1168 = vadd.f32 %v256, %v1167
    %v1169 = vpop.f32.mrb[0].mxu0
    %v1170 = vadd.f32 %v260, %v1169
    %1171 = vmatprep.mubr.bf16.mxu0 %v550
    %1172 = vmatmul.mubr.bf16.gmra.mrb[0].mxu0 %v549
    %v1173 = vpop.f32.mrb[0].mxu0
    %v1174 = vadd.f32 %v256, %v1173
    %v1175 = vpop.f32.mrb[0].mxu0
    %v1176 = vadd.f32 %v260, %v1175
    %v1177 = vpop.f32.mrb[0].mxu0
    %v1178 = vadd.f32 %v256, %v1177
    %v1179 = vpop.f32.mrb[0].mxu0
    %v1180 = vadd.f32 %v260, %v1179
    %1181 = vmatprep.mubr.bf16.mxu0 %v555
    %1182 = vmatmul.mubr.bf16.gmra.mrb[0].mxu0 %v554
    %v1183 = vpop.f32.mrb[0].mxu0
    %v1184 = vadd.f32 %v256, %v1183
    %v1185 = vpop.f32.mrb[0].mxu0
    %v1186 = vadd.f32 %v260, %v1185
    %v1187 = vpop.f32.mrb[0].mxu0
    %v1188 = vadd.f32 %v256, %v1187
    %v1189 = vpop.f32.mrb[0].mxu0
    %v1190 = vadd.f32 %v260, %v1189
    %1191 = vmatprep.mubr.bf16.mxu0 %v560
    %1192 = vmatmul.mubr.bf16.gmra.mrb[0].mxu0 %v559
    %v1193 = vpop.f32.mrb[0].mxu0
    %v1194 = vadd.f32 %v256, %v1193
    %v1195 = vpop.f32.mrb[0].mxu0
    %v1196 = vadd.f32 %v260, %v1195
    %v1197 = vpop.f32.mrb[0].mxu0
    %v1198 = vadd.f32 %v256, %v1197
    %v1199 = vpop.f32.mrb[0].mxu0
    %v1200 = vadd.f32 %v260, %v1199
    %1201 = vmatprep.mubr.bf16.mxu0 %v565
    %1202 = vmatmul.mubr.bf16.gmra.mrb[0].mxu0 %v564
    %v1203 = vpop.f32.mrb[0].mxu0
    %v1204 = vadd.f32 %v256, %v1203
    %v1205 = vpop.f32.mrb[0].mxu0
    %v1206 = vadd.f32 %v260, %v1205
    %v1207 = vpop.f32.mrb[0].mxu0
    %v1208 = vadd.f32 %v256, %v1207
    %v1209 = vpop.f32.mrb[0].mxu0
    %v1210 = vadd.f32 %v260, %v1209
    %1211 = vmatprep.mubr.bf16.mxu0 %v570
    %1212 = vmatmul.mubr.bf16.gmra.mrb[0].mxu0 %v569
    %v1213 = vpop.f32.mrb[0].mxu0
    %v1214 = vadd.f32 %v256, %v1213
    %v1215 = vpop.f32.mrb[0].mxu0
    %v1216 = vadd.f32 %v260, %v1215
    %v1217 = vpop.f32.mrb[0].mxu0
    %v1218 = vadd.f32 %v256, %v1217
    %v1219 = vpop.f32.mrb[0].mxu0
    %v1220 = vadd.f32 %v260, %v1219
    %1221 = vmatprep.mubr.bf16.mxu0 %v575
    %1222 = vmatmul.mubr.bf16.gmra.mrb[0].mxu0 %v574
    %v1223 = vpop.f32.mrb[0].mxu0
    %v1224 = vadd.f32 %v256, %v1223
    %v1225 = vpop.f32.mrb[0].mxu0
    %v1226 = vadd.f32 %v260, %v1225
    %v1227 = vpop.f32.mrb[0].mxu0
    %v1228 = vadd.f32 %v256, %v1227
    %v1229 = vpop.f32.mrb[0].mxu0
    %v1230 = vadd.f32 %v260, %v1229
    %1231 = vmatprep.mubr.bf16.mxu0 %v580
    %1232 = vmatmul.mubr.bf16.gmra.mrb[0].mxu0 %v579
    %v1233 = vpop.f32.mrb[0].mxu0
    %v1234 = vadd.f32 %v256, %v1233
    %v1235 = vpop.f32.mrb[0].mxu0
    %v1236 = vadd.f32 %v260, %v1235
    %v1237 = vpop.f32.mrb[0].mxu0
    %v1238 = vadd.f32 %v256, %v1237
    %v1239 = vpop.f32.mrb[0].mxu0
    %v1240 = vadd.f32 %v260, %v1239
    %1241 = vmatprep.mubr.bf16.mxu0 %v585
    %1242 = vmatmul.mubr.bf16.gmra.mrb[0].mxu0 %v584
    %v1243 = vpop.f32.mrb[0].mxu0
    %v1244 = vadd.f32 %v256, %v1243
    %v1245 = vpop.f32.mrb[0].mxu0
    %v1246 = vadd.f32 %v260, %v1245
    %v1247 = vpop.f32.mrb[0].mxu0
    %v1248 = vadd.f32 %v256, %v1247
    %v1249 = vpop.f32.mrb[0].mxu0
    %v1250 = vadd.f32 %v260, %v1249
    %1251 = vmatprep.mubr.bf16.mxu0 %v590
    %1252 = vmatmul.mubr.bf16.gmra.mrb[0].mxu0 %v589
    %v1253 = vpop.f32.mrb[0].mxu0
    %v1254 = vadd.f32 %v256, %v1253
    %v1255 = vpop.f32.mrb[0].mxu0
    %v1256 = vadd.f32 %v260, %v1255
    %v1257 = vpop.f32.mrb[0].mxu0
    %v1258 = vadd.f32 %v256, %v1257
    %v1259 = vpop.f32.mrb[0].mxu0
    %v1260 = vadd.f32 %v260, %v1259
    %1261 = vmatprep.mubr.bf16.mxu0 %v595
    %1262 = vmatmul.mubr.bf16.gmra.mrb[0].mxu0 %v594
    %v1263 = vpop.f32.mrb[0].mxu0
    %v1264 = vadd.f32 %v256, %v1263
    %v1265 = vpop.f32.mrb[0].mxu0
    %v1266 = vadd.f32 %v260, %v1265
    %v1267 = vpop.f32.mrb[0].mxu0
    %v1268 = vadd.f32 %v256, %v1267
    %v1269 = vpop.f32.mrb[0].mxu0
    %v1270 = vadd.f32 %v260, %v1269
    %1271 = vdwg.mxu0
    %1272 = vmatprep.subr.bf16.mxu0 %v952
    %1273 = vmatpush1.bf16.msra.mxu0 %v951
    %1274 = vmatprep.subr.bf16.mxu0 %v954
    %1275 = vmatpush1.bf16.msra.mxu0 %v953
    %1276 = vmatprep.subr.bf16.mxu0 %v956
    %1277 = vmatpush1.bf16.msra.mxu0 %v955
    %1278 = vmatprep.subr.bf16.mxu0 %v958
    %1279 = vmatpush1.bf16.msra.mxu0 %v957
    %1280 = vmatprep.subr.bf16.mxu0 %v960
    %1281 = vmatpush1.bf16.msra.mxu0 %v959
    %1282 = vmatprep.subr.bf16.mxu0 %v962
    %1283 = vmatpush1.bf16.msra.mxu0 %v961
    %1284 = vmatprep.subr.bf16.mxu0 %v964
    %1285 = vmatpush1.bf16.msra.mxu0 %v963
    %1286 = vmatprep.subr.bf16.mxu0 %v966
    %1287 = vmatpush1.bf16.msra.mxu0 %v965
    %1288 = vmatprep.subr.bf16.mxu0 %v968
    %1289 = vmatpush1.bf16.msra.mxu0 %v967
    %1290 = vmatprep.subr.bf16.mxu0 %v970
    %1291 = vmatpush1.bf16.msra.mxu0 %v969
    %1292 = vmatprep.subr.bf16.mxu0 %v972
    %1293 = vmatpush1.bf16.msra.mxu0 %v971
    %1294 = vmatprep.subr.bf16.mxu0 %v974
    %1295 = vmatpush1.bf16.msra.mxu0 %v973
    %1296 = vmatprep.subr.bf16.mxu0 %v976
    %1297 = vmatpush1.bf16.msra.mxu0 %v975
    %1298 = vmatprep.subr.bf16.mxu0 %v978
    %1299 = vmatpush1.bf16.msra.mxu0 %v977
    %1300 = vmatprep.subr.bf16.mxu0 %v980
    %1301 = vmatpush1.bf16.msra.mxu0 %v979
    %1302 = vmatprep.subr.bf16.mxu0 %v982
    %1303 = vmatpush1.bf16.msra.mxu0 %v981
    %1304 = vmatprep.mubr.bf16.mxu0 %v522
    %1305 = vmatmul.mubr.bf16.gmra.mrb[0].mxu0 %v521
    %v1306 = vpop.f32.mrb[0].mxu0
    %v1307 = vadd.f32 %v1114, %v1306
    %v1308 = vpop.f32.mrb[0].mxu0
    %v1309 = vadd.f32 %v1116, %v1308
    %v1310 = vpop.f32.mrb[0].mxu0
    %v1311 = vadd.f32 %v1118, %v1310
    %v1312 = vpop.f32.mrb[0].mxu0
    %v1313 = vadd.f32 %v1120, %v1312
    %1314 = vmatprep.mubr.bf16.mxu0 %v527
    %1315 = vmatmul.mubr.bf16.gmra.mrb[0].mxu0 %v526
    %v1316 = vpop.f32.mrb[0].mxu0
    %v1317 = vadd.f32 %v1124, %v1316
    %v1318 = vpop.f32.mrb[0].mxu0
    %v1319 = vadd.f32 %v1126, %v1318
    %v1320 = vpop.f32.mrb[0].mxu0
    %v1321 = vadd.f32 %v1128, %v1320
    %v1322 = vpop.f32.mrb[0].mxu0
    %v1323 = vadd.f32 %v1130, %v1322
    %1324 = vmatprep.mubr.bf16.mxu0 %v532
    %1325 = vmatmul.mubr.bf16.gmra.mrb[0].mxu0 %v531
    %v1326 = vpop.f32.mrb[0].mxu0
    %v1327 = vadd.f32 %v1134, %v1326
    %v1328 = vpop.f32.mrb[0].mxu0
    %v1329 = vadd.f32 %v1136, %v1328
    %v1330 = vpop.f32.mrb[0].mxu0
    %v1331 = vadd.f32 %v1138, %v1330
    %v1332 = vpop.f32.mrb[0].mxu0
    %v1333 = vadd.f32 %v1140, %v1332
    %1334 = vmatprep.mubr.bf16.mxu0 %v537
    %1335 = vmatmul.mubr.bf16.gmra.mrb[0].mxu0 %v536
    %v1336 = vpop.f32.mrb[0].mxu0
    %v1337 = vadd.f32 %v1144, %v1336
    %v1338 = vpop.f32.mrb[0].mxu0
    %v1339 = vadd.f32 %v1146, %v1338
    %v1340 = vpop.f32.mrb[0].mxu0
    %v1341 = vadd.f32 %v1148, %v1340
    %v1342 = vpop.f32.mrb[0].mxu0
    %v1343 = vadd.f32 %v1150, %v1342
    %1344 = vmatprep.mubr.bf16.mxu0 %v542
    %1345 = vmatmul.mubr.bf16.gmra.mrb[0].mxu0 %v541
    %v1346 = vpop.f32.mrb[0].mxu0
    %v1347 = vadd.f32 %v1154, %v1346
    %v1348 = vpop.f32.mrb[0].mxu0
    %v1349 = vadd.f32 %v1156, %v1348
    %v1350 = vpop.f32.mrb[0].mxu0
    %v1351 = vadd.f32 %v1158, %v1350
    %v1352 = vpop.f32.mrb[0].mxu0
    %v1353 = vadd.f32 %v1160, %v1352
    %1354 = vmatprep.mubr.bf16.mxu0 %v547
    %1355 = vmatmul.mubr.bf16.gmra.mrb[0].mxu0 %v546
    %v1356 = vpop.f32.mrb[0].mxu0
    %v1357 = vadd.f32 %v1164, %v1356
    %v1358 = vpop.f32.mrb[0].mxu0
    %v1359 = vadd.f32 %v1166, %v1358
    %v1360 = vpop.f32.mrb[0].mxu0
    %v1361 = vadd.f32 %v1168, %v1360
    %v1362 = vpop.f32.mrb[0].mxu0
    %v1363 = vadd.f32 %v1170, %v1362
    %1364 = vmatprep.mubr.bf16.mxu0 %v552
    %1365 = vmatmul.mubr.bf16.gmra.mrb[0].mxu0 %v551
    %v1366 = vpop.f32.mrb[0].mxu0
    %v1367 = vadd.f32 %v1174, %v1366
    %v1368 = vpop.f32.mrb[0].mxu0
    %v1369 = vadd.f32 %v1176, %v1368
    %v1370 = vpop.f32.mrb[0].mxu0
    %v1371 = vadd.f32 %v1178, %v1370
    %v1372 = vpop.f32.mrb[0].mxu0
    %v1373 = vadd.f32 %v1180, %v1372
    %1374 = vmatprep.mubr.bf16.mxu0 %v557
    %1375 = vmatmul.mubr.bf16.gmra.mrb[0].mxu0 %v556
    %v1376 = vpop.f32.mrb[0].mxu0
    %v1377 = vadd.f32 %v1184, %v1376
    %v1378 = vpop.f32.mrb[0].mxu0
    %v1379 = vadd.f32 %v1186, %v1378
    %v1380 = vpop.f32.mrb[0].mxu0
    %v1381 = vadd.f32 %v1188, %v1380
    %v1382 = vpop.f32.mrb[0].mxu0
    %v1383 = vadd.f32 %v1190, %v1382
    %1384 = vmatprep.mubr.bf16.mxu0 %v562
    %1385 = vmatmul.mubr.bf16.gmra.mrb[0].mxu0 %v561
    %v1386 = vpop.f32.mrb[0].mxu0
    %v1387 = vadd.f32 %v1194, %v1386
    %v1388 = vpop.f32.mrb[0].mxu0
    %v1389 = vadd.f32 %v1196, %v1388
    %v1390 = vpop.f32.mrb[0].mxu0
    %v1391 = vadd.f32 %v1198, %v1390
    %v1392 = vpop.f32.mrb[0].mxu0
    %v1393 = vadd.f32 %v1200, %v1392
    %1394 = vmatprep.mubr.bf16.mxu0 %v567
    %1395 = vmatmul.mubr.bf16.gmra.mrb[0].mxu0 %v566
    %v1396 = vpop.f32.mrb[0].mxu0
    %v1397 = vadd.f32 %v1204, %v1396
    %v1398 = vpop.f32.mrb[0].mxu0
    %v1399 = vadd.f32 %v1206, %v1398
    %v1400 = vpop.f32.mrb[0].mxu0
    %v1401 = vadd.f32 %v1208, %v1400
    %v1402 = vpop.f32.mrb[0].mxu0
    %v1403 = vadd.f32 %v1210, %v1402
    %1404 = vmatprep.mubr.bf16.mxu0 %v572
    %1405 = vmatmul.mubr.bf16.gmra.mrb[0].mxu0 %v571
    %v1406 = vpop.f32.mrb[0].mxu0
    %v1407 = vadd.f32 %v1214, %v1406
    %v1408 = vpop.f32.mrb[0].mxu0
    %v1409 = vadd.f32 %v1216, %v1408
    %v1410 = vpop.f32.mrb[0].mxu0
    %v1411 = vadd.f32 %v1218, %v1410
    %v1412 = vpop.f32.mrb[0].mxu0
    %v1413 = vadd.f32 %v1220, %v1412
    %1414 = vmatprep.mubr.bf16.mxu0 %v577
    %1415 = vmatmul.mubr.bf16.gmra.mrb[0].mxu0 %v576
    %v1416 = vpop.f32.mrb[0].mxu0
    %v1417 = vadd.f32 %v1224, %v1416
    %v1418 = vpop.f32.mrb[0].mxu0
    %v1419 = vadd.f32 %v1226, %v1418
    %v1420 = vpop.f32.mrb[0].mxu0
    %v1421 = vadd.f32 %v1228, %v1420
    %v1422 = vpop.f32.mrb[0].mxu0
    %v1423 = vadd.f32 %v1230, %v1422
    %1424 = vmatprep.mubr.bf16.mxu0 %v582
    %1425 = vmatmul.mubr.bf16.gmra.mrb[0].mxu0 %v581
    %v1426 = vpop.f32.mrb[0].mxu0
    %v1427 = vadd.f32 %v1234, %v1426
    %v1428 = vpop.f32.mrb[0].mxu0
    %v1429 = vadd.f32 %v1236, %v1428
    %v1430 = vpop.f32.mrb[0].mxu0
    %v1431 = vadd.f32 %v1238, %v1430
    %v1432 = vpop.f32.mrb[0].mxu0
    %v1433 = vadd.f32 %v1240, %v1432
    %1434 = vmatprep.mubr.bf16.mxu0 %v587
    %1435 = vmatmul.mubr.bf16.gmra.mrb[0].mxu0 %v586
    %v1436 = vpop.f32.mrb[0].mxu0
    %v1437 = vadd.f32 %v1244, %v1436
    %v1438 = vpop.f32.mrb[0].mxu0
    %v1439 = vadd.f32 %v1246, %v1438
    %v1440 = vpop.f32.mrb[0].mxu0
    %v1441 = vadd.f32 %v1248, %v1440
    %v1442 = vpop.f32.mrb[0].mxu0
    %v1443 = vadd.f32 %v1250, %v1442
    %1444 = vmatprep.mubr.bf16.mxu0 %v592
    %1445 = vmatmul.mubr.bf16.gmra.mrb[0].mxu0 %v591
    %v1446 = vpop.f32.mrb[0].mxu0
    %v1447 = vadd.f32 %v1254, %v1446
    %v1448 = vpop.f32.mrb[0].mxu0
    %v1449 = vadd.f32 %v1256, %v1448
    %v1450 = vpop.f32.mrb[0].mxu0
    %v1451 = vadd.f32 %v1258, %v1450
    %v1452 = vpop.f32.mrb[0].mxu0
    %v1453 = vadd.f32 %v1260, %v1452
    %1454 = vmatprep.mubr.bf16.mxu0 %v597
    %1455 = vmatmul.mubr.bf16.gmra.mrb[0].mxu0 %v596
    %v1456 = vpop.f32.mrb[0].mxu0
    %v1457 = vadd.f32 %v1264, %v1456
    %v1458 = vpop.f32.mrb[0].mxu0
    %v1459 = vadd.f32 %v1266, %v1458
    %v1460 = vpop.f32.mrb[0].mxu0
    %v1461 = vadd.f32 %v1268, %v1460
    %v1462 = vpop.f32.mrb[0].mxu0
    %v1463 = vadd.f32 %v1270, %v1462
    %1464 = vdwg.mxu0
    %1465 = vmatprep.subr.bf16.mxu0 %v984
    %1466 = vmatpush1.bf16.msra.mxu0 %v983
    %1467 = vmatprep.subr.bf16.mxu0 %v986
    %1468 = vmatpush1.bf16.msra.mxu0 %v985
    %1469 = vmatprep.subr.bf16.mxu0 %v988
    %1470 = vmatpush1.bf16.msra.mxu0 %v987
    %1471 = vmatprep.subr.bf16.mxu0 %v990
    %1472 = vmatpush1.bf16.msra.mxu0 %v989
    %1473 = vmatprep.subr.bf16.mxu0 %v992
    %1474 = vmatpush1.bf16.msra.mxu0 %v991
    %1475 = vmatprep.subr.bf16.mxu0 %v994
    %1476 = vmatpush1.bf16.msra.mxu0 %v993
    %1477 = vmatprep.subr.bf16.mxu0 %v996
    %1478 = vmatpush1.bf16.msra.mxu0 %v995
    %1479 = vmatprep.subr.bf16.mxu0 %v998
    %1480 = vmatpush1.bf16.msra.mxu0 %v997
    %1481 = vmatprep.subr.bf16.mxu0 0
    %1482 = vmatpush1.bf16.msra.mxu0 0
    %1483 = vmatprep.subr.bf16.mxu0 0
    %1484 = vmatpush1.bf16.msra.mxu0 0
    %1485 = vmatprep.subr.bf16.mxu0 0
    %1486 = vmatpush1.bf16.msra.mxu0 0
    %1487 = vmatprep.subr.bf16.mxu0 0
    %1488 = vmatpush1.bf16.msra.mxu0 0
    %1489 = vmatprep.subr.bf16.mxu0 0
    %1490 = vmatpush1.bf16.msra.mxu0 0
    %1491 = vmatprep.subr.bf16.mxu0 0
    %1492 = vmatpush1.bf16.msra.mxu0 0
    %1493 = vmatprep.subr.bf16.mxu0 0
    %1494 = vmatpush1.bf16.msra.mxu0 0
    %1495 = vmatprep.subr.bf16.mxu0 0
    %1496 = vmatpush1.bf16.msra.mxu0 0
    %1497 = vmatprep.mubr.bf16.mxu0 0
    %1498 = vmatmul.mubr.bf16.gmra.mrb[0].mxu0 %v523
    %v1499 = vpop.f32.mrb[0].mxu0
    %v1500 = vadd.f32 %v1307, %v1499
    %v1501 = vpop.f32.mrb[0].mxu0
    %v1502 = vadd.f32 %v1309, %v1501
    %v1503 = vpop.f32.mrb[0].mxu0
    %v1504 = vadd.f32 %v1311, %v1503
    %v1505 = vpop.f32.mrb[0].mxu0
    %v1506 = vadd.f32 %v1313, %v1505
    %1507 = vmatprep.mubr.bf16.mxu0 0
    %1508 = vmatmul.mubr.bf16.gmra.mrb[0].mxu0 %v528
    %v1509 = vpop.f32.mrb[0].mxu0
    %v1510 = vadd.f32 %v1317, %v1509
    %v1511 = vpop.f32.mrb[0].mxu0
    %v1512 = vadd.f32 %v1319, %v1511
    %v1513 = vpop.f32.mrb[0].mxu0
    %v1514 = vadd.f32 %v1321, %v1513
    %v1515 = vpop.f32.mrb[0].mxu0
    %v1516 = vadd.f32 %v1323, %v1515
    %1517 = vmatprep.mubr.bf16.mxu0 0
    %1518 = vmatmul.mubr.bf16.gmra.mrb[0].mxu0 %v533
    %v1519 = vpop.f32.mrb[0].mxu0
    %v1520 = vadd.f32 %v1327, %v1519
    %v1521 = vpop.f32.mrb[0].mxu0
    %v1522 = vadd.f32 %v1329, %v1521
    %v1523 = vpop.f32.mrb[0].mxu0
    %v1524 = vadd.f32 %v1331, %v1523
    %v1525 = vpop.f32.mrb[0].mxu0
    %v1526 = vadd.f32 %v1333, %v1525
    %1527 = vmatprep.mubr.bf16.mxu0 0
    %1528 = vmatmul.mubr.bf16.gmra.mrb[0].mxu0 %v538
    %v1529 = vpop.f32.mrb[0].mxu0
    %v1530 = vadd.f32 %v1337, %v1529
    %v1531 = vpop.f32.mrb[0].mxu0
    %v1532 = vadd.f32 %v1339, %v1531
    %v1533 = vpop.f32.mrb[0].mxu0
    %v1534 = vadd.f32 %v1341, %v1533
    %v1535 = vpop.f32.mrb[0].mxu0
    %v1536 = vadd.f32 %v1343, %v1535
    %1537 = vmatprep.mubr.bf16.mxu0 0
    %1538 = vmatmul.mubr.bf16.gmra.mrb[0].mxu0 %v543
    %v1539 = vpop.f32.mrb[0].mxu0
    %v1540 = vadd.f32 %v1347, %v1539
    %v1541 = vpop.f32.mrb[0].mxu0
    %v1542 = vadd.f32 %v1349, %v1541
    %v1543 = vpop.f32.mrb[0].mxu0
    %v1544 = vadd.f32 %v1351, %v1543
    %v1545 = vpop.f32.mrb[0].mxu0
    %v1546 = vadd.f32 %v1353, %v1545
    %1547 = vmatprep.mubr.bf16.mxu0 0
    %1548 = vmatmul.mubr.bf16.gmra.mrb[0].mxu0 %v548
    %v1549 = vpop.f32.mrb[0].mxu0
    %v1550 = vadd.f32 %v1357, %v1549
    %v1551 = vpop.f32.mrb[0].mxu0
    %v1552 = vadd.f32 %v1359, %v1551
    %v1553 = vpop.f32.mrb[0].mxu0
    %v1554 = vadd.f32 %v1361, %v1553
    %v1555 = vpop.f32.mrb[0].mxu0
    %v1556 = vadd.f32 %v1363, %v1555
    %1557 = vmatprep.mubr.bf16.mxu0 0
    %1558 = vmatmul.mubr.bf16.gmra.mrb[0].mxu0 %v553
    %v1559 = vpop.f32.mrb[0].mxu0
    %v1560 = vadd.f32 %v1367, %v1559
    %v1561 = vpop.f32.mrb[0].mxu0
    %v1562 = vadd.f32 %v1369, %v1561
    %v1563 = vpop.f32.mrb[0].mxu0
    %v1564 = vadd.f32 %v1371, %v1563
    %v1565 = vpop.f32.mrb[0].mxu0
    %v1566 = vadd.f32 %v1373, %v1565
    %1567 = vmatprep.mubr.bf16.mxu0 0
    %1568 = vmatmul.mubr.bf16.gmra.mrb[0].mxu0 %v558
    %v1569 = vpop.f32.mrb[0].mxu0
    %v1570 = vadd.f32 %v1377, %v1569
    %v1571 = vpop.f32.mrb[0].mxu0
    %v1572 = vadd.f32 %v1379, %v1571
    %v1573 = vpop.f32.mrb[0].mxu0
    %v1574 = vadd.f32 %v1381, %v1573
    %v1575 = vpop.f32.mrb[0].mxu0
    %v1576 = vadd.f32 %v1383, %v1575
    %1577 = vmatprep.mubr.bf16.mxu0 0
    %1578 = vmatmul.mubr.bf16.gmra.mrb[0].mxu0 %v563
    %v1579 = vpop.f32.mrb[0].mxu0
    %v1580 = vadd.f32 %v1387, %v1579
    %v1581 = vpop.f32.mrb[0].mxu0
    %v1582 = vadd.f32 %v1389, %v1581
    %v1583 = vpop.f32.mrb[0].mxu0
    %v1584 = vadd.f32 %v1391, %v1583
    %v1585 = vpop.f32.mrb[0].mxu0
    %v1586 = vadd.f32 %v1393, %v1585
    %1587 = vmatprep.mubr.bf16.mxu0 0
    %1588 = vmatmul.mubr.bf16.gmra.mrb[0].mxu0 %v568
    %v1589 = vpop.f32.mrb[0].mxu0
    %v1590 = vadd.f32 %v1397, %v1589
    %v1591 = vpop.f32.mrb[0].mxu0
    %v1592 = vadd.f32 %v1399, %v1591
    %v1593 = vpop.f32.mrb[0].mxu0
    %v1594 = vadd.f32 %v1401, %v1593
    %v1595 = vpop.f32.mrb[0].mxu0
    %v1596 = vadd.f32 %v1403, %v1595
    %1597 = vmatprep.mubr.bf16.mxu0 0
    %1598 = vmatmul.mubr.bf16.gmra.mrb[0].mxu0 %v573
    %v1599 = vpop.f32.mrb[0].mxu0
    %v1600 = vadd.f32 %v1407, %v1599
    %v1601 = vpop.f32.mrb[0].mxu0
    %v1602 = vadd.f32 %v1409, %v1601
    %v1603 = vpop.f32.mrb[0].mxu0
    %v1604 = vadd.f32 %v1411, %v1603
    %v1605 = vpop.f32.mrb[0].mxu0
    %v1606 = vadd.f32 %v1413, %v1605
    %1607 = vmatprep.mubr.bf16.mxu0 0
    %1608 = vmatmul.mubr.bf16.gmra.mrb[0].mxu0 %v578
    %v1609 = vpop.f32.mrb[0].mxu0
    %v1610 = vadd.f32 %v1417, %v1609
    %v1611 = vpop.f32.mrb[0].mxu0
    %v1612 = vadd.f32 %v1419, %v1611
    %v1613 = vpop.f32.mrb[0].mxu0
    %v1614 = vadd.f32 %v1421, %v1613
    %v1615 = vpop.f32.mrb[0].mxu0
    %v1616 = vadd.f32 %v1423, %v1615
    %1617 = vmatprep.mubr.bf16.mxu0 0
    %1618 = vmatmul.mubr.bf16.gmra.mrb[0].mxu0 %v583
    %v1619 = vpop.f32.mrb[0].mxu0
    %v1620 = vadd.f32 %v1427, %v1619
    %v1621 = vpop.f32.mrb[0].mxu0
    %v1622 = vadd.f32 %v1429, %v1621
    %v1623 = vpop.f32.mrb[0].mxu0
    %v1624 = vadd.f32 %v1431, %v1623
    %v1625 = vpop.f32.mrb[0].mxu0
    %v1626 = vadd.f32 %v1433, %v1625
    %1627 = vmatprep.mubr.bf16.mxu0 0
    %1628 = vmatmul.mubr.bf16.gmra.mrb[0].mxu0 %v588
    %v1629 = vpop.f32.mrb[0].mxu0
    %v1630 = vadd.f32 %v1437, %v1629
    %v1631 = vpop.f32.mrb[0].mxu0
    %v1632 = vadd.f32 %v1439, %v1631
    %v1633 = vpop.f32.mrb[0].mxu0
    %v1634 = vadd.f32 %v1441, %v1633
    %v1635 = vpop.f32.mrb[0].mxu0
    %v1636 = vadd.f32 %v1443, %v1635
    %1637 = vmatprep.mubr.bf16.mxu0 0
    %1638 = vmatmul.mubr.bf16.gmra.mrb[0].mxu0 %v593
    %v1639 = vpop.f32.mrb[0].mxu0
    %v1640 = vadd.f32 %v1447, %v1639
    %v1641 = vpop.f32.mrb[0].mxu0
    %v1642 = vadd.f32 %v1449, %v1641
    %v1643 = vpop.f32.mrb[0].mxu0
    %v1644 = vadd.f32 %v1451, %v1643
    %v1645 = vpop.f32.mrb[0].mxu0
    %v1646 = vadd.f32 %v1453, %v1645
    %1647 = vmatprep.mubr.bf16.mxu0 0
    %1648 = vmatmul.mubr.bf16.gmra.mrb[0].mxu0 %v598
    %v1649 = vpop.f32.mrb[0].mxu0
    %v1650 = vadd.f32 %v1457, %v1649
    %v1651 = vpop.f32.mrb[0].mxu0
    %v1652 = vadd.f32 %v1459, %v1651
    %v1653 = vpop.f32.mrb[0].mxu0
    %v1654 = vadd.f32 %v1461, %v1653
    %v1655 = vpop.f32.mrb[0].mxu0
    %v1656 = vadd.f32 %v1463, %v1655
    %1657 = vdwg.mxu0
    %v1658 = vmax.f32 %v1500, 0.0
    %v1659 = vmax.f32 %v1502, 0.0
    %v1660 = vmax.f32 %v1504, 0.0
    %v1661 = vmax.f32 %v1506, 0.0
    %v1662 = vmax.f32 %v1510, 0.0
    %v1663 = vmax.f32 %v1512, 0.0
    %v1664 = vmax.f32 %v1514, 0.0
    %v1665 = vmax.f32 %v1516, 0.0
    %v1666 = vmax.f32 %v1520, 0.0
    %v1667 = vmax.f32 %v1522, 0.0
    %v1668 = vmax.f32 %v1524, 0.0
    %v1669 = vmax.f32 %v1526, 0.0
    %v1670 = vmax.f32 %v1530, 0.0
    %v1671 = vmax.f32 %v1532, 0.0
    %v1672 = vmax.f32 %v1534, 0.0
    %v1673 = vmax.f32 %v1536, 0.0
    %v1674 = vmax.f32 %v1540, 0.0
    %v1675 = vmax.f32 %v1542, 0.0
    %v1676 = vmax.f32 %v1544, 0.0
    %v1677 = vmax.f32 %v1546, 0.0
    %v1678 = vmax.f32 %v1550, 0.0
    %v1679 = vmax.f32 %v1552, 0.0
    %v1680 = vmax.f32 %v1554, 0.0
    %v1681 = vmax.f32 %v1556, 0.0
    %v1682 = vmax.f32 %v1560, 0.0
    %v1683 = vmax.f32 %v1562, 0.0
    %v1684 = vmax.f32 %v1564, 0.0
    %v1685 = vmax.f32 %v1566, 0.0
    %v1686 = vmax.f32 %v1570, 0.0
    %v1687 = vmax.f32 %v1572, 0.0
    %v1688 = vmax.f32 %v1574, 0.0
    %v1689 = vmax.f32 %v1576, 0.0
    %v1690 = vmax.f32 %v1580, 0.0
    %v1691 = vmax.f32 %v1582, 0.0
    %v1692 = vmax.f32 %v1584, 0.0
    %v1693 = vmax.f32 %v1586, 0.0
    %v1694 = vmax.f32 %v1590, 0.0
    %v1695 = vmax.f32 %v1592, 0.0
    %v1696 = vmax.f32 %v1594, 0.0
    %v1697 = vmax.f32 %v1596, 0.0
    %v1698 = vmax.f32 %v1600, 0.0
    %v1699 = vmax.f32 %v1602, 0.0
    %v1700 = vmax.f32 %v1604, 0.0
    %v1701 = vmax.f32 %v1606, 0.0
    %v1702 = vmax.f32 %v1610, 0.0
    %v1703 = vmax.f32 %v1612, 0.0
    %v1704 = vmax.f32 %v1614, 0.0
    %v1705 = vmax.f32 %v1616, 0.0
    %v1706 = vmax.f32 %v1620, 0.0
    %v1707 = vmax.f32 %v1622, 0.0
    %v1708 = vmax.f32 %v1624, 0.0
    %v1709 = vmax.f32 %v1626, 0.0
    %v1710 = vmax.f32 %v1630, 0.0
    %v1711 = vmax.f32 %v1632, 0.0
    %v1712 = vmax.f32 %v1634, 0.0
    %v1713 = vmax.f32 %v1636, 0.0
    %v1714 = vmax.f32 %v1640, 0.0
    %v1715 = vmax.f32 %v1642, 0.0
    %v1716 = vmax.f32 %v1644, 0.0
    %v1717 = vmax.f32 %v1646, 0.0
    %v1718 = vmax.f32 %v1650, 0.0
    %v1719 = vmax.f32 %v1652, 0.0
    %v1720 = vmax.f32 %v1654, 0.0
    %v1721 = vmax.f32 %v1656, 0.0
    %v1722 = vpack.c.bf16 %v1660, %v1658
    %v1723 = vpack.c.bf16 %v1661, %v1659
    %v1724 = vpack.c.bf16 %v1664, %v1662
    %v1725 = vpack.c.bf16 %v1665, %v1663
    %v1726 = vpack.c.bf16 %v1668, %v1666
    %v1727 = vpack.c.bf16 %v1669, %v1667
    %v1728 = vpack.c.bf16 %v1672, %v1670
    %v1729 = vpack.c.bf16 %v1673, %v1671
    %v1730 = vpack.c.bf16 %v1676, %v1674
    %v1731 = vpack.c.bf16 %v1677, %v1675
    %v1732 = vpack.c.bf16 %v1680, %v1678
    %v1733 = vpack.c.bf16 %v1681, %v1679
    %v1734 = vpack.c.bf16 %v1684, %v1682
    %v1735 = vpack.c.bf16 %v1685, %v1683
    %v1736 = vpack.c.bf16 %v1688, %v1686
    %v1737 = vpack.c.bf16 %v1689, %v1687
    %v1738 = vpack.c.bf16 %v1692, %v1690
    %v1739 = vpack.c.bf16 %v1693, %v1691
    %v1740 = vpack.c.bf16 %v1696, %v1694
    %v1741 = vpack.c.bf16 %v1697, %v1695
    %v1742 = vpack.c.bf16 %v1700, %v1698
    %v1743 = vpack.c.bf16 %v1701, %v1699
    %v1744 = vpack.c.bf16 %v1704, %v1702
    %v1745 = vpack.c.bf16 %v1705, %v1703
    %v1746 = vpack.c.bf16 %v1708, %v1706
    %v1747 = vpack.c.bf16 %v1709, %v1707
    %v1748 = vpack.c.bf16 %v1712, %v1710
    %v1749 = vpack.c.bf16 %v1713, %v1711
    %v1750 = vpack.c.bf16 %v1716, %v1714
    %v1751 = vpack.c.bf16 %v1717, %v1715
    %v1752 = vpack.c.bf16 %v1720, %v1718
    %v1753 = vpack.c.bf16 %v1721, %v1719
    %v1754 = vld [vmem:[#allocation7] sm:$0xf]
    %v1755 = vld [vmem:[#allocation7 + $0x4] sm:$0xf]
    %v1756 = vld [vmem:[#allocation7 + $0x8] sm:$0xf]
    %v1757 = vld [vmem:[#allocation7 + $0xc] sm:$0xf]
    %v1758 = vld [vmem:[#allocation7 + $0x10] sm:$0xf]
    %v1759 = vld [vmem:[#allocation7 + $0x14] sm:$0xf]
    %v1760 = vld [vmem:[#allocation7 + $0x18] sm:$0xf]
    %v1761 = vld [vmem:[#allocation7 + $0x1c] sm:$0xf]
    %v1762 = vld [vmem:[#allocation7 + $0x20] sm:$0xf]
    %v1763 = vld [vmem:[#allocation7 + $0x24] sm:$0xf]
    %v1764 = vld [vmem:[#allocation7 + $0x28] sm:$0xf]
    %v1765 = vld [vmem:[#allocation7 + $0x2c] sm:$0xf]
    %v1766 = vld [vmem:[#allocation7 + $0x30] sm:$0xf]
    %v1767 = vld [vmem:[#allocation7 + $0x34] sm:$0xf]
    %v1768 = vld [vmem:[#allocation7 + $0x38] sm:$0xf]
    %v1769 = vld [vmem:[#allocation7 + $0x3c] sm:$0xf]
    %v1770 = vld [vmem:[#allocation7 + $0x40] sm:$0xf]
    %v1771 = vld [vmem:[#allocation7 + $0x44] sm:$0xf]
    %v1772 = vld [vmem:[#allocation7 + $0x48] sm:$0xf]
    %v1773 = vld [vmem:[#allocation7 + $0x4c] sm:$0xf]
    %v1774 = vld [vmem:[#allocation7 + $0x50] sm:$0xf]
    %v1775 = vld [vmem:[#allocation7 + $0x54] sm:$0xf]
    %v1776 = vld [vmem:[#allocation7 + $0x58] sm:$0xf]
    %v1777 = vld [vmem:[#allocation7 + $0x5c] sm:$0xf]
    %v1778 = vld [vmem:[#allocation7 + $0x60] sm:$0xf]
    %v1779 = vld [vmem:[#allocation7 + $0x64] sm:$0xf]
    %v1780 = vld [vmem:[#allocation7 + $0x68] sm:$0xf]
    %v1781 = vld [vmem:[#allocation7 + $0x6c] sm:$0xf]
    %v1782 = vld [vmem:[#allocation7 + $0x70] sm:$0xf]
    %v1783 = vld [vmem:[#allocation7 + $0x74] sm:$0xf]
    %v1784 = vld [vmem:[#allocation7 + $0x78] sm:$0xf]
    %v1785 = vld [vmem:[#allocation7 + $0x7c] sm:$0xf]
    %v1786 = vld [vmem:[%s4] sm:$0x1]
    %v1788 = vlaneseq
    %v1789 = vshrl.u32 %v1788, 7
    %v1790 = vsub.s32 0, %v1789
    %v1791 = vrot.slane %v1786, %v1790
    %v1825 = vunpack.c.l.b16 %v1754
    %v1826 = vunpack.c.l.b16 %v1755
    %v1827 = vunpack.c.l.b16 %v1756
    %v1828 = vunpack.c.l.b16 %v1757
    %v1829 = vunpack.c.l.b16 %v1758
    %v1830 = vunpack.c.l.b16 %v1759
    %v1831 = vunpack.c.l.b16 %v1760
    %v1832 = vunpack.c.l.b16 %v1761
    %v1833 = vunpack.c.l.b16 %v1762
    %v1834 = vunpack.c.l.b16 %v1763
    %v1835 = vunpack.c.l.b16 %v1764
    %v1836 = vunpack.c.l.b16 %v1765
    %v1837 = vunpack.c.l.b16 %v1766
    %v1838 = vunpack.c.l.b16 %v1767
    %v1839 = vunpack.c.l.b16 %v1768
    %v1840 = vunpack.c.l.b16 %v1769
    %v1841 = vunpack.c.l.b16 %v1770
    %v1842 = vunpack.c.l.b16 %v1771
    %v1843 = vunpack.c.l.b16 %v1772
    %v1844 = vunpack.c.l.b16 %v1773
    %v1845 = vunpack.c.l.b16 %v1774
    %v1846 = vunpack.c.l.b16 %v1775
    %v1847 = vunpack.c.l.b16 %v1776
    %v1848 = vunpack.c.l.b16 %v1777
    %v1849 = vunpack.c.l.b16 %v1778
    %v1850 = vunpack.c.l.b16 %v1779
    %v1851 = vunpack.c.l.b16 %v1780
    %v1852 = vunpack.c.l.b16 %v1781
    %v1853 = vunpack.c.l.b16 %v1782
    %v1854 = vunpack.c.l.b16 %v1783
    %v1855 = vunpack.c.l.b16 %v1784
    %v1856 = vunpack.c.l.b16 %v1785
    %v1857 = vpack.c.b16 %v1826, %v1825
    %v1858 = vpack.c.b16 %v1828, %v1827
    %v1859 = vpack.c.b16 %v1830, %v1829
    %v1860 = vpack.c.b16 %v1832, %v1831
    %v1861 = vpack.c.b16 %v1834, %v1833
    %v1862 = vpack.c.b16 %v1836, %v1835
    %v1863 = vpack.c.b16 %v1838, %v1837
    %v1864 = vpack.c.b16 %v1840, %v1839
    %v1865 = vpack.c.b16 %v1842, %v1841
    %v1866 = vpack.c.b16 %v1844, %v1843
    %v1867 = vpack.c.b16 %v1846, %v1845
    %v1868 = vpack.c.b16 %v1848, %v1847
    %v1869 = vpack.c.b16 %v1850, %v1849
    %v1870 = vpack.c.b16 %v1852, %v1851
    %v1871 = vpack.c.b16 %v1854, %v1853
    %v1872 = vpack.c.b16 %v1856, %v1855
    %1889 = vmatprep.subr.bf16.mxu0 0
    %1890 = vmatpush1.bf16.msra.mxu0 %v1857
    %1891 = vmatprep.subr.bf16.mxu0 0
    %1892 = vmatpush1.bf16.msra.mxu0 %v1858
    %1893 = vmatprep.subr.bf16.mxu0 0
    %1894 = vmatpush1.bf16.msra.mxu0 %v1859
    %1895 = vmatprep.subr.bf16.mxu0 0
    %1896 = vmatpush1.bf16.msra.mxu0 %v1860
    %1897 = vmatprep.subr.bf16.mxu0 0
    %1898 = vmatpush1.bf16.msra.mxu0 %v1861
    %1899 = vmatprep.subr.bf16.mxu0 0
    %1900 = vmatpush1.bf16.msra.mxu0 %v1862
    %1901 = vmatprep.subr.bf16.mxu0 0
    %1902 = vmatpush1.bf16.msra.mxu0 %v1863
    %1903 = vmatprep.subr.bf16.mxu0 0
    %1904 = vmatpush1.bf16.msra.mxu0 %v1864
    %1905 = vmatprep.subr.bf16.mxu0 0
    %1906 = vmatpush1.bf16.msra.mxu0 %v1865
    %1907 = vmatprep.subr.bf16.mxu0 0
    %1908 = vmatpush1.bf16.msra.mxu0 %v1866
    %1909 = vmatprep.subr.bf16.mxu0 0
    %1910 = vmatpush1.bf16.msra.mxu0 %v1867
    %1911 = vmatprep.subr.bf16.mxu0 0
    %1912 = vmatpush1.bf16.msra.mxu0 %v1868
    %1913 = vmatprep.subr.bf16.mxu0 0
    %1914 = vmatpush1.bf16.msra.mxu0 %v1869
    %1915 = vmatprep.subr.bf16.mxu0 0
    %1916 = vmatpush1.bf16.msra.mxu0 %v1870
    %1917 = vmatprep.subr.bf16.mxu0 0
    %1918 = vmatpush1.bf16.msra.mxu0 %v1871
    %1919 = vmatprep.subr.bf16.mxu0 0
    %1920 = vmatpush1.bf16.msra.mxu0 %v1872
    %1921 = vmatprep.mubr.bf16.mxu0 %v1723
    %1922 = vmatmul.mubr.bf16.gmra.mrb[0].mxu0 %v1722
    %v1923 = vpop.f32.mrb[0].mxu0
    %v1924 = vadd.f32 %v1791, %v1923
    %v1925 = vpop.f32.mrb[0].mxu0
    %v1926 = vpop.f32.mrb[0].mxu0
    %v1927 = vadd.f32 %v1791, %v1926
    %v1928 = vpop.f32.mrb[0].mxu0
    %1929 = vmatprep.mubr.bf16.mxu0 %v1725
    %1930 = vmatmul.mubr.bf16.gmra.mrb[0].mxu0 %v1724
    %v1931 = vpop.f32.mrb[0].mxu0
    %v1932 = vadd.f32 %v1791, %v1931
    %v1933 = vpop.f32.mrb[0].mxu0
    %v1934 = vpop.f32.mrb[0].mxu0
    %v1935 = vadd.f32 %v1791, %v1934
    %v1936 = vpop.f32.mrb[0].mxu0
    %1937 = vmatprep.mubr.bf16.mxu0 %v1727
    %1938 = vmatmul.mubr.bf16.gmra.mrb[0].mxu0 %v1726
    %v1939 = vpop.f32.mrb[0].mxu0
    %v1940 = vadd.f32 %v1791, %v1939
    %v1941 = vpop.f32.mrb[0].mxu0
    %v1942 = vpop.f32.mrb[0].mxu0
    %v1943 = vadd.f32 %v1791, %v1942
    %v1944 = vpop.f32.mrb[0].mxu0
    %1945 = vmatprep.mubr.bf16.mxu0 %v1729
    %1946 = vmatmul.mubr.bf16.gmra.mrb[0].mxu0 %v1728
    %v1947 = vpop.f32.mrb[0].mxu0
    %v1948 = vadd.f32 %v1791, %v1947
    %v1949 = vpop.f32.mrb[0].mxu0
    %v1950 = vpop.f32.mrb[0].mxu0
    %v1951 = vadd.f32 %v1791, %v1950
    %v1952 = vpop.f32.mrb[0].mxu0
    %1953 = vmatprep.mubr.bf16.mxu0 %v1731
    %1954 = vmatmul.mubr.bf16.gmra.mrb[0].mxu0 %v1730
    %v1955 = vpop.f32.mrb[0].mxu0
    %v1956 = vadd.f32 %v1791, %v1955
    %v1957 = vpop.f32.mrb[0].mxu0
    %v1958 = vpop.f32.mrb[0].mxu0
    %v1959 = vadd.f32 %v1791, %v1958
    %v1960 = vpop.f32.mrb[0].mxu0
    %1961 = vmatprep.mubr.bf16.mxu0 %v1733
    %1962 = vmatmul.mubr.bf16.gmra.mrb[0].mxu0 %v1732
    %v1963 = vpop.f32.mrb[0].mxu0
    %v1964 = vadd.f32 %v1791, %v1963
    %v1965 = vpop.f32.mrb[0].mxu0
    %v1966 = vpop.f32.mrb[0].mxu0
    %v1967 = vadd.f32 %v1791, %v1966
    %v1968 = vpop.f32.mrb[0].mxu0
    %1969 = vmatprep.mubr.bf16.mxu0 %v1735
    %1970 = vmatmul.mubr.bf16.gmra.mrb[0].mxu0 %v1734
    %v1971 = vpop.f32.mrb[0].mxu0
    %v1972 = vadd.f32 %v1791, %v1971
    %v1973 = vpop.f32.mrb[0].mxu0
    %v1974 = vpop.f32.mrb[0].mxu0
    %v1975 = vadd.f32 %v1791, %v1974
    %v1976 = vpop.f32.mrb[0].mxu0
    %1977 = vmatprep.mubr.bf16.mxu0 %v1737
    %1978 = vmatmul.mubr.bf16.gmra.mrb[0].mxu0 %v1736
    %v1979 = vpop.f32.mrb[0].mxu0
    %v1980 = vadd.f32 %v1791, %v1979
    %v1981 = vpop.f32.mrb[0].mxu0
    %v1982 = vpop.f32.mrb[0].mxu0
    %v1983 = vadd.f32 %v1791, %v1982
    %v1984 = vpop.f32.mrb[0].mxu0
    %1985 = vmatprep.mubr.bf16.mxu0 %v1739
    %1986 = vmatmul.mubr.bf16.gmra.mrb[0].mxu0 %v1738
    %v1987 = vpop.f32.mrb[0].mxu0
    %v1988 = vadd.f32 %v1791, %v1987
    %v1989 = vpop.f32.mrb[0].mxu0
    %v1990 = vpop.f32.mrb[0].mxu0
    %v1991 = vadd.f32 %v1791, %v1990
    %v1992 = vpop.f32.mrb[0].mxu0
    %1993 = vmatprep.mubr.bf16.mxu0 %v1741
    %1994 = vmatmul.mubr.bf16.gmra.mrb[0].mxu0 %v1740
    %v1995 = vpop.f32.mrb[0].mxu0
    %v1996 = vadd.f32 %v1791, %v1995
    %v1997 = vpop.f32.mrb[0].mxu0
    %v1998 = vpop.f32.mrb[0].mxu0
    %v1999 = vadd.f32 %v1791, %v1998
    %v2000 = vpop.f32.mrb[0].mxu0
    %2001 = vmatprep.mubr.bf16.mxu0 %v1743
    %2002 = vmatmul.mubr.bf16.gmra.mrb[0].mxu0 %v1742
    %v2003 = vpop.f32.mrb[0].mxu0
    %v2004 = vadd.f32 %v1791, %v2003
    %v2005 = vpop.f32.mrb[0].mxu0
    %v2006 = vpop.f32.mrb[0].mxu0
    %v2007 = vadd.f32 %v1791, %v2006
    %v2008 = vpop.f32.mrb[0].mxu0
    %2009 = vmatprep.mubr.bf16.mxu0 %v1745
    %2010 = vmatmul.mubr.bf16.gmra.mrb[0].mxu0 %v1744
    %v2011 = vpop.f32.mrb[0].mxu0
    %v2012 = vadd.f32 %v1791, %v2011
    %v2013 = vpop.f32.mrb[0].mxu0
    %v2014 = vpop.f32.mrb[0].mxu0
    %v2015 = vadd.f32 %v1791, %v2014
    %v2016 = vpop.f32.mrb[0].mxu0
    %2017 = vmatprep.mubr.bf16.mxu0 %v1747
    %2018 = vmatmul.mubr.bf16.gmra.mrb[0].mxu0 %v1746
    %v2019 = vpop.f32.mrb[0].mxu0
    %v2020 = vadd.f32 %v1791, %v2019
    %v2021 = vpop.f32.mrb[0].mxu0
    %v2022 = vpop.f32.mrb[0].mxu0
    %v2023 = vadd.f32 %v1791, %v2022
    %v2024 = vpop.f32.mrb[0].mxu0
    %2025 = vmatprep.mubr.bf16.mxu0 %v1749
    %2026 = vmatmul.mubr.bf16.gmra.mrb[0].mxu0 %v1748
    %v2027 = vpop.f32.mrb[0].mxu0
    %v2028 = vadd.f32 %v1791, %v2027
    %v2029 = vpop.f32.mrb[0].mxu0
    %v2030 = vpop.f32.mrb[0].mxu0
    %v2031 = vadd.f32 %v1791, %v2030
    %v2032 = vpop.f32.mrb[0].mxu0
    %2033 = vmatprep.mubr.bf16.mxu0 %v1751
    %2034 = vmatmul.mubr.bf16.gmra.mrb[0].mxu0 %v1750
    %v2035 = vpop.f32.mrb[0].mxu0
    %v2036 = vadd.f32 %v1791, %v2035
    %v2037 = vpop.f32.mrb[0].mxu0
    %v2038 = vpop.f32.mrb[0].mxu0
    %v2039 = vadd.f32 %v1791, %v2038
    %v2040 = vpop.f32.mrb[0].mxu0
    %2041 = vmatprep.mubr.bf16.mxu0 %v1753
    %2042 = vmatmul.mubr.bf16.gmra.mrb[0].mxu0 %v1752
    %v2043 = vpop.f32.mrb[0].mxu0
    %v2044 = vadd.f32 %v1791, %v2043
    %v2045 = vpop.f32.mrb[0].mxu0
    %v2046 = vpop.f32.mrb[0].mxu0
    %v2047 = vadd.f32 %v1791, %v2046
    %v2048 = vpop.f32.mrb[0].mxu0
    %2049 = vdwg.mxu0
    %v2050 = vmax.f32 %v1924, 0.0
    %v2051 = vmax.f32 %v1927, 0.0
    %v2052 = vmax.f32 %v1932, 0.0
    %v2053 = vmax.f32 %v1935, 0.0
    %v2054 = vmax.f32 %v1940, 0.0
    %v2055 = vmax.f32 %v1943, 0.0
    %v2056 = vmax.f32 %v1948, 0.0
    %v2057 = vmax.f32 %v1951, 0.0
    %v2058 = vmax.f32 %v1956, 0.0
    %v2059 = vmax.f32 %v1959, 0.0
    %v2060 = vmax.f32 %v1964, 0.0
    %v2061 = vmax.f32 %v1967, 0.0
    %v2062 = vmax.f32 %v1972, 0.0
    %v2063 = vmax.f32 %v1975, 0.0
    %v2064 = vmax.f32 %v1980, 0.0
    %v2065 = vmax.f32 %v1983, 0.0
    %v2066 = vmax.f32 %v1988, 0.0
    %v2067 = vmax.f32 %v1991, 0.0
    %v2068 = vmax.f32 %v1996, 0.0
    %v2069 = vmax.f32 %v1999, 0.0
    %v2070 = vmax.f32 %v2004, 0.0
    %v2071 = vmax.f32 %v2007, 0.0
    %v2072 = vmax.f32 %v2012, 0.0
    %v2073 = vmax.f32 %v2015, 0.0
    %v2074 = vmax.f32 %v2020, 0.0
    %v2075 = vmax.f32 %v2023, 0.0
    %v2076 = vmax.f32 %v2028, 0.0
    %v2077 = vmax.f32 %v2031, 0.0
    %v2078 = vmax.f32 %v2036, 0.0
    %v2079 = vmax.f32 %v2039, 0.0
    %v2080 = vmax.f32 %v2044, 0.0
    %v2081 = vmax.f32 %v2047, 0.0
    %v2082 = vpack.c.bf16 %v2051, %v2050
    %v2083 = vpack.c.bf16 %v2053, %v2052
    %v2084 = vpack.c.bf16 %v2055, %v2054
    %v2085 = vpack.c.bf16 %v2057, %v2056
    %v2086 = vpack.c.bf16 %v2059, %v2058
    %v2087 = vpack.c.bf16 %v2061, %v2060
    %v2088 = vpack.c.bf16 %v2063, %v2062
    %v2089 = vpack.c.bf16 %v2065, %v2064
    %v2090 = vpack.c.bf16 %v2067, %v2066
    %v2091 = vpack.c.bf16 %v2069, %v2068
    %v2092 = vpack.c.bf16 %v2071, %v2070
    %v2093 = vpack.c.bf16 %v2073, %v2072
    %v2094 = vpack.c.bf16 %v2075, %v2074
    %v2095 = vpack.c.bf16 %v2077, %v2076
    %v2096 = vpack.c.bf16 %v2079, %v2078
    %v2097 = vpack.c.bf16 %v2081, %v2080
    %v2098 = vld [vmem:[%s5] sm:$0xf]
    %v2099 = vld [vmem:[%s5 + $0x4] sm:$0xf]
    %v2100 = vld [vmem:[%s5 + $0x8] sm:$0xf]
    %v2101 = vld [vmem:[%s5 + $0xc] sm:$0xf]
    %v2102 = vld [vmem:[%s5 + $0x10] sm:$0xf]
    %v2103 = vld [vmem:[%s5 + $0x14] sm:$0xf]
    %v2104 = vld [vmem:[%s5 + $0x18] sm:$0xf]
    %v2105 = vld [vmem:[%s5 + $0x1c] sm:$0xf]
    %v2106 = vld [vmem:[%s5 + $0x20] sm:$0xf]
    %v2107 = vld [vmem:[%s5 + $0x24] sm:$0xf]
    %v2108 = vld [vmem:[%s5 + $0x28] sm:$0xf]
    %v2109 = vld [vmem:[%s5 + $0x2c] sm:$0xf]
    %v2110 = vld [vmem:[%s5 + $0x30] sm:$0xf]
    %v2111 = vld [vmem:[%s5 + $0x34] sm:$0xf]
    %v2112 = vld [vmem:[%s5 + $0x38] sm:$0xf]
    %v2113 = vld [vmem:[%s5 + $0x3c] sm:$0xf]
    %v2114 = vld [vmem:[%s6] sm:$0x1]
    %v2116 = vlaneseq
    %v2117 = vshrl.u32 %v2116, 7
    %v2118 = vsub.s32 0, %v2117
    %v2119 = vrot.slane %v2114, %v2118
    %v2137 = vunpack.c.l.b16 %v2098
    %v2138 = vunpack.c.l.b16 %v2099
    %v2139 = vunpack.c.l.b16 %v2100
    %v2140 = vunpack.c.l.b16 %v2101
    %v2141 = vunpack.c.l.b16 %v2102
    %v2142 = vunpack.c.l.b16 %v2103
    %v2143 = vunpack.c.l.b16 %v2104
    %v2144 = vunpack.c.l.b16 %v2105
    %v2145 = vunpack.c.l.b16 %v2106
    %v2146 = vunpack.c.l.b16 %v2107
    %v2147 = vunpack.c.l.b16 %v2108
    %v2148 = vunpack.c.l.b16 %v2109
    %v2149 = vunpack.c.l.b16 %v2110
    %v2150 = vunpack.c.l.b16 %v2111
    %v2151 = vunpack.c.l.b16 %v2112
    %v2152 = vunpack.c.l.b16 %v2113
    %v2153 = vpack.c.b16 %v2138, %v2137
    %v2154 = vpack.c.b16 %v2140, %v2139
    %v2155 = vpack.c.b16 %v2142, %v2141
    %v2156 = vpack.c.b16 %v2144, %v2143
    %v2157 = vpack.c.b16 %v2146, %v2145
    %v2158 = vpack.c.b16 %v2148, %v2147
    %v2159 = vpack.c.b16 %v2150, %v2149
    %v2160 = vpack.c.b16 %v2152, %v2151
    %2169 = vmatprep.subr.bf16.mxu0 0
    %2170 = vmatpush1.bf16.msra.mxu0 %v2153
    %2171 = vmatprep.subr.bf16.mxu0 0
    %2172 = vmatpush1.bf16.msra.mxu0 %v2154
    %2173 = vmatprep.subr.bf16.mxu0 0
    %2174 = vmatpush1.bf16.msra.mxu0 %v2155
    %2175 = vmatprep.subr.bf16.mxu0 0
    %2176 = vmatpush1.bf16.msra.mxu0 %v2156
    %2177 = vmatprep.subr.bf16.mxu0 0
    %2178 = vmatpush1.bf16.msra.mxu0 %v2157
    %2179 = vmatprep.subr.bf16.mxu0 0
    %2180 = vmatpush1.bf16.msra.mxu0 %v2158
    %2181 = vmatprep.subr.bf16.mxu0 0
    %2182 = vmatpush1.bf16.msra.mxu0 %v2159
    %2183 = vmatprep.subr.bf16.mxu0 0
    %2184 = vmatpush1.bf16.msra.mxu0 %v2160
    %2185 = vmatprep.subr.bf16.mxu0 0
    %2186 = vmatpush1.bf16.msra.mxu0 0
    %2187 = vmatprep.subr.bf16.mxu0 0
    %2188 = vmatpush1.bf16.msra.mxu0 0
    %2189 = vmatprep.subr.bf16.mxu0 0
    %2190 = vmatpush1.bf16.msra.mxu0 0
    %2191 = vmatprep.subr.bf16.mxu0 0
    %2192 = vmatpush1.bf16.msra.mxu0 0
    %2193 = vmatprep.subr.bf16.mxu0 0
    %2194 = vmatpush1.bf16.msra.mxu0 0
    %2195 = vmatprep.subr.bf16.mxu0 0
    %2196 = vmatpush1.bf16.msra.mxu0 0
    %2197 = vmatprep.subr.bf16.mxu0 0
    %2198 = vmatpush1.bf16.msra.mxu0 0
    %2199 = vmatprep.subr.bf16.mxu0 0
    %2200 = vmatpush1.bf16.msra.mxu0 0
    %2201 = vmatprep.mubr.bf16.mxu0 0
    %2202 = vmatmul.mubr.bf16.gmra.mrb[0].mxu0 %v2082
    %v2203 = vpop.f32.mrb[0].mxu0
    %v2204 = vadd.f32 %v2119, %v2203
    %v2205 = vpop.f32.mrb[0].mxu0
    %v2206 = vpop.f32.mrb[0].mxu0
    %v2207 = vadd.f32 %v2119, %v2206
    %v2208 = vpop.f32.mrb[0].mxu0
    %2209 = vmatprep.mubr.bf16.mxu0 0
    %2210 = vmatmul.mubr.bf16.gmra.mrb[0].mxu0 %v2083
    %v2211 = vpop.f32.mrb[0].mxu0
    %v2212 = vadd.f32 %v2119, %v2211
    %v2213 = vpop.f32.mrb[0].mxu0
    %v2214 = vpop.f32.mrb[0].mxu0
    %v2215 = vadd.f32 %v2119, %v2214
    %v2216 = vpop.f32.mrb[0].mxu0
    %2217 = vmatprep.mubr.bf16.mxu0 0
    %2218 = vmatmul.mubr.bf16.gmra.mrb[0].mxu0 %v2084
    %v2219 = vpop.f32.mrb[0].mxu0
    %v2220 = vadd.f32 %v2119, %v2219
    %v2221 = vpop.f32.mrb[0].mxu0
    %v2222 = vpop.f32.mrb[0].mxu0
    %v2223 = vadd.f32 %v2119, %v2222
    %v2224 = vpop.f32.mrb[0].mxu0
    %2225 = vmatprep.mubr.bf16.mxu0 0
    %2226 = vmatmul.mubr.bf16.gmra.mrb[0].mxu0 %v2085
    %v2227 = vpop.f32.mrb[0].mxu0
    %v2228 = vadd.f32 %v2119, %v2227
    %v2229 = vpop.f32.mrb[0].mxu0
    %v2230 = vpop.f32.mrb[0].mxu0
    %v2231 = vadd.f32 %v2119, %v2230
    %v2232 = vpop.f32.mrb[0].mxu0
    %2233 = vmatprep.mubr.bf16.mxu0 0
    %2234 = vmatmul.mubr.bf16.gmra.mrb[0].mxu0 %v2086
    %v2235 = vpop.f32.mrb[0].mxu0
    %v2236 = vadd.f32 %v2119, %v2235
    %v2237 = vpop.f32.mrb[0].mxu0
    %v2238 = vpop.f32.mrb[0].mxu0
    %v2239 = vadd.f32 %v2119, %v2238
    %v2240 = vpop.f32.mrb[0].mxu0
    %2241 = vmatprep.mubr.bf16.mxu0 0
    %2242 = vmatmul.mubr.bf16.gmra.mrb[0].mxu0 %v2087
    %v2243 = vpop.f32.mrb[0].mxu0
    %v2244 = vadd.f32 %v2119, %v2243
    %v2245 = vpop.f32.mrb[0].mxu0
    %v2246 = vpop.f32.mrb[0].mxu0
    %v2247 = vadd.f32 %v2119, %v2246
    %v2248 = vpop.f32.mrb[0].mxu0
    %2249 = vmatprep.mubr.bf16.mxu0 0
    %2250 = vmatmul.mubr.bf16.gmra.mrb[0].mxu0 %v2088
    %v2251 = vpop.f32.mrb[0].mxu0
    %v2252 = vadd.f32 %v2119, %v2251
    %v2253 = vpop.f32.mrb[0].mxu0
    %v2254 = vpop.f32.mrb[0].mxu0
    %v2255 = vadd.f32 %v2119, %v2254
    %v2256 = vpop.f32.mrb[0].mxu0
    %2257 = vmatprep.mubr.bf16.mxu0 0
    %2258 = vmatmul.mubr.bf16.gmra.mrb[0].mxu0 %v2089
    %v2259 = vpop.f32.mrb[0].mxu0
    %v2260 = vadd.f32 %v2119, %v2259
    %v2261 = vpop.f32.mrb[0].mxu0
    %v2262 = vpop.f32.mrb[0].mxu0
    %v2263 = vadd.f32 %v2119, %v2262
    %v2264 = vpop.f32.mrb[0].mxu0
    %2265 = vmatprep.mubr.bf16.mxu0 0
    %2266 = vmatmul.mubr.bf16.gmra.mrb[0].mxu0 %v2090
    %v2267 = vpop.f32.mrb[0].mxu0
    %v2268 = vadd.f32 %v2119, %v2267
    %v2269 = vpop.f32.mrb[0].mxu0
    %v2270 = vpop.f32.mrb[0].mxu0
    %v2271 = vadd.f32 %v2119, %v2270
    %v2272 = vpop.f32.mrb[0].mxu0
    %2273 = vmatprep.mubr.bf16.mxu0 0
    %2274 = vmatmul.mubr.bf16.gmra.mrb[0].mxu0 %v2091
    %v2275 = vpop.f32.mrb[0].mxu0
    %v2276 = vadd.f32 %v2119, %v2275
    %v2277 = vpop.f32.mrb[0].mxu0
    %v2278 = vpop.f32.mrb[0].mxu0
    %v2279 = vadd.f32 %v2119, %v2278
    %v2280 = vpop.f32.mrb[0].mxu0
    %2281 = vmatprep.mubr.bf16.mxu0 0
    %2282 = vmatmul.mubr.bf16.gmra.mrb[0].mxu0 %v2092
    %v2283 = vpop.f32.mrb[0].mxu0
    %v2284 = vadd.f32 %v2119, %v2283
    %v2285 = vpop.f32.mrb[0].mxu0
    %v2286 = vpop.f32.mrb[0].mxu0
    %v2287 = vadd.f32 %v2119, %v2286
    %v2288 = vpop.f32.mrb[0].mxu0
    %2289 = vmatprep.mubr.bf16.mxu0 0
    %2290 = vmatmul.mubr.bf16.gmra.mrb[0].mxu0 %v2093
    %v2291 = vpop.f32.mrb[0].mxu0
    %v2292 = vadd.f32 %v2119, %v2291
    %v2293 = vpop.f32.mrb[0].mxu0
    %v2294 = vpop.f32.mrb[0].mxu0
    %v2295 = vadd.f32 %v2119, %v2294
    %v2296 = vpop.f32.mrb[0].mxu0
    %2297 = vmatprep.mubr.bf16.mxu0 0
    %2298 = vmatmul.mubr.bf16.gmra.mrb[0].mxu0 %v2094
    %v2299 = vpop.f32.mrb[0].mxu0
    %v2300 = vadd.f32 %v2119, %v2299
    %v2301 = vpop.f32.mrb[0].mxu0
    %v2302 = vpop.f32.mrb[0].mxu0
    %v2303 = vadd.f32 %v2119, %v2302
    %v2304 = vpop.f32.mrb[0].mxu0
    %2305 = vmatprep.mubr.bf16.mxu0 0
    %2306 = vmatmul.mubr.bf16.gmra.mrb[0].mxu0 %v2095
    %v2307 = vpop.f32.mrb[0].mxu0
    %v2308 = vadd.f32 %v2119, %v2307
    %v2309 = vpop.f32.mrb[0].mxu0
    %v2310 = vpop.f32.mrb[0].mxu0
    %v2311 = vadd.f32 %v2119, %v2310
    %v2312 = vpop.f32.mrb[0].mxu0
    %2313 = vmatprep.mubr.bf16.mxu0 0
    %2314 = vmatmul.mubr.bf16.gmra.mrb[0].mxu0 %v2096
    %v2315 = vpop.f32.mrb[0].mxu0
    %v2316 = vadd.f32 %v2119, %v2315
    %v2317 = vpop.f32.mrb[0].mxu0
    %v2318 = vpop.f32.mrb[0].mxu0
    %v2319 = vadd.f32 %v2119, %v2318
    %v2320 = vpop.f32.mrb[0].mxu0
    %2321 = vmatprep.mubr.bf16.mxu0 0
    %2322 = vmatmul.mubr.bf16.gmra.mrb[0].mxu0 %v2097
    %v2323 = vpop.f32.mrb[0].mxu0
    %v2324 = vadd.f32 %v2119, %v2323
    %v2325 = vpop.f32.mrb[0].mxu0
    %v2326 = vpop.f32.mrb[0].mxu0
    %v2327 = vadd.f32 %v2119, %v2326
    %v2328 = vpop.f32.mrb[0].mxu0
    %2329 = vdwg.mxu0
    %v2330 = vmax.f32 %v2204, 0.0
    %v2331 = vmax.f32 %v2207, 0.0
    %v2332 = vmax.f32 %v2212, 0.0
    %v2333 = vmax.f32 %v2215, 0.0
    %v2334 = vmax.f32 %v2220, 0.0
    %v2335 = vmax.f32 %v2223, 0.0
    %v2336 = vmax.f32 %v2228, 0.0
    %v2337 = vmax.f32 %v2231, 0.0
    %v2338 = vmax.f32 %v2236, 0.0
    %v2339 = vmax.f32 %v2239, 0.0
    %v2340 = vmax.f32 %v2244, 0.0
    %v2341 = vmax.f32 %v2247, 0.0
    %v2342 = vmax.f32 %v2252, 0.0
    %v2343 = vmax.f32 %v2255, 0.0
    %v2344 = vmax.f32 %v2260, 0.0
    %v2345 = vmax.f32 %v2263, 0.0
    %v2346 = vmax.f32 %v2268, 0.0
    %v2347 = vmax.f32 %v2271, 0.0
    %v2348 = vmax.f32 %v2276, 0.0
    %v2349 = vmax.f32 %v2279, 0.0
    %v2350 = vmax.f32 %v2284, 0.0
    %v2351 = vmax.f32 %v2287, 0.0
    %v2352 = vmax.f32 %v2292, 0.0
    %v2353 = vmax.f32 %v2295, 0.0
    %v2354 = vmax.f32 %v2300, 0.0
    %v2355 = vmax.f32 %v2303, 0.0
    %v2356 = vmax.f32 %v2308, 0.0
    %v2357 = vmax.f32 %v2311, 0.0
    %v2358 = vmax.f32 %v2316, 0.0
    %v2359 = vmax.f32 %v2319, 0.0
    %v2360 = vmax.f32 %v2324, 0.0
    %v2361 = vmax.f32 %v2327, 0.0
    %v2362 = vld [vmem:[%s7] sm:$0xff]
    %v2363 = vld [vmem:[%s7 + $0x8] sm:$0xff]
    %v2364 = vld [vmem:[%s7 + $0x10] sm:$0xff]
    %v2365 = vld [vmem:[%s7 + $0x18] sm:$0xff]
    %v2366 = vld [vmem:[%s8] sm:$0x1]
    %v2368 = vlaneseq
    %v2369 = vshrl.u32 %v2368, 7
    %v2370 = vsub.s32 0, %v2369
    %v2371 = vrot.slane %v2366, %v2370
    %vm2373 = vcmask 261120
    %v2375 = vsel %vm2373, %v2330, 0
    %v2378 = vsel %vm2373, %v2331, 0
    %v2381 = vsel %vm2373, %v2332, 0
    %v2384 = vsel %vm2373, %v2333, 0
    %v2387 = vsel %vm2373, %v2334, 0
    %v2390 = vsel %vm2373, %v2335, 0
    %v2393 = vsel %vm2373, %v2336, 0
    %v2396 = vsel %vm2373, %v2337, 0
    %v2399 = vsel %vm2373, %v2338, 0
    %v2402 = vsel %vm2373, %v2339, 0
    %v2405 = vsel %vm2373, %v2340, 0
    %v2408 = vsel %vm2373, %v2341, 0
    %v2411 = vsel %vm2373, %v2342, 0
    %v2414 = vsel %vm2373, %v2343, 0
    %v2417 = vsel %vm2373, %v2344, 0
    %v2420 = vsel %vm2373, %v2345, 0
    %v2423 = vsel %vm2373, %v2346, 0
    %v2426 = vsel %vm2373, %v2347, 0
    %v2429 = vsel %vm2373, %v2348, 0
    %v2432 = vsel %vm2373, %v2349, 0
    %v2435 = vsel %vm2373, %v2350, 0
    %v2438 = vsel %vm2373, %v2351, 0
    %v2441 = vsel %vm2373, %v2352, 0
    %v2444 = vsel %vm2373, %v2353, 0
    %v2447 = vsel %vm2373, %v2354, 0
    %v2450 = vsel %vm2373, %v2355, 0
    %v2453 = vsel %vm2373, %v2356, 0
    %v2456 = vsel %vm2373, %v2357, 0
    %v2459 = vsel %vm2373, %v2358, 0
    %v2462 = vsel %vm2373, %v2359, 0
    %v2465 = vsel %vm2373, %v2360, 0
    %v2468 = vsel %vm2373, %v2361, 0
    %2470 = vmatprep.subr.mxu0 0.0
    %2471 = vmatpush1.msra.mxu0 %v2362
    %2472 = vmatprep.subr.mxu0 0.0
    %2473 = vmatpush1.msra.mxu0 %v2363
    %2474 = vmatprep.subr.mxu0 0.0
    %2475 = vmatpush1.msra.mxu0 %v2364
    %2476 = vmatprep.subr.mxu0 0.0
    %2477 = vmatpush1.msra.mxu0 %v2365
    %2478 = vmatprep.subr.mxu0 0.0
    %2479 = vmatpush1.msra.mxu0 0.0
    %2480 = vmatprep.subr.mxu0 0.0
    %2481 = vmatpush1.msra.mxu0 0.0
    %2482 = vmatprep.subr.mxu0 0.0
    %2483 = vmatpush1.msra.mxu0 0.0
    %2484 = vmatprep.subr.mxu0 0.0
    %2485 = vmatpush1.msra.mxu0 0.0
    %2486 = vmatprep.subr.mxu0 0.0
    %2487 = vmatpush1.msra.mxu0 0.0
    %2488 = vmatprep.subr.mxu0 0.0
    %2489 = vmatpush1.msra.mxu0 0.0
    %2490 = vmatprep.subr.mxu0 0.0
    %2491 = vmatpush1.msra.mxu0 0.0
    %2492 = vmatprep.subr.mxu0 0.0
    %2493 = vmatpush1.msra.mxu0 0.0
    %2494 = vmatprep.subr.mxu0 0.0
    %2495 = vmatpush1.msra.mxu0 0.0
    %2496 = vmatprep.subr.mxu0 0.0
    %2497 = vmatpush1.msra.mxu0 0.0
    %2498 = vmatprep.subr.mxu0 0.0
    %2499 = vmatpush1.msra.mxu0 0.0
    %2500 = vmatprep.subr.mxu0 0.0
    %2501 = vmatpush1.msra.mxu0 0.0
    %2502 = vmatprep.subr.mxu0 0.0
    %2503 = vmatpush1.msra.mxu0 0.0
    %2504 = vmatprep.subr.mxu0 0.0
    %2505 = vmatpush1.msra.mxu0 0.0
    %2506 = vmatprep.subr.mxu0 0.0
    %2507 = vmatpush1.msra.mxu0 0.0
    %2508 = vmatprep.subr.mxu0 0.0
    %2509 = vmatpush1.msra.mxu0 0.0
    %2510 = vmatprep.subr.mxu0 0.0
    %2511 = vmatpush1.msra.mxu0 0.0
    %2512 = vmatprep.subr.mxu0 0.0
    %2513 = vmatpush1.msra.mxu0 0.0
    %2514 = vmatprep.subr.mxu0 0.0
    %2515 = vmatpush1.msra.mxu0 0.0
    %2516 = vmatprep.subr.mxu0 0.0
    %2517 = vmatpush1.msra.mxu0 0.0
    %2518 = vmatprep.subr.mxu0 0.0
    %2519 = vmatpush1.msra.mxu0 0.0
    %2520 = vmatprep.subr.mxu0 0.0
    %2521 = vmatpush1.msra.mxu0 0.0
    %2522 = vmatprep.subr.mxu0 0.0
    %2523 = vmatpush1.msra.mxu0 0.0
    %2524 = vmatprep.subr.mxu0 0.0
    %2525 = vmatpush1.msra.mxu0 0.0
    %2526 = vmatprep.subr.mxu0 0.0
    %2527 = vmatpush1.msra.mxu0 0.0
    %2528 = vmatprep.subr.mxu0 0.0
    %2529 = vmatpush1.msra.mxu0 0.0
    %2530 = vmatprep.subr.mxu0 0.0
    %2531 = vmatpush1.msra.mxu0 0.0
    %2532 = vmatprep.subr.mxu0 0.0
    %2533 = vmatpush1.msra.mxu0 0.0
    %2534 = vmatprep.mubr.f32.mxu0 0.0
    %2535 = vmatmul.mubr.f32.gmra.mrb[0].mxu0 %v2375
    %v2536 = vpop.f32.mrb[0].mxu0
    %v2537 = vadd.f32 %v2371, %v2536
    %v2538 = vpop.f32.mrb[0].mxu0
    %2539 = vmatprep.mubr.f32.mxu0 0.0
    %2540 = vmatmul.mubr.f32.gmra.mrb[0].mxu0 %v2378
    %v2541 = vpop.f32.mrb[0].mxu0
    %v2542 = vadd.f32 %v2371, %v2541
    %v2543 = vpop.f32.mrb[0].mxu0
    %2544 = vmatprep.mubr.f32.mxu0 0.0
    %2545 = vmatmul.mubr.f32.gmra.mrb[0].mxu0 %v2381
    %v2546 = vpop.f32.mrb[0].mxu0
    %v2547 = vadd.f32 %v2371, %v2546
    %v2548 = vpop.f32.mrb[0].mxu0
    %2549 = vmatprep.mubr.f32.mxu0 0.0
    %2550 = vmatmul.mubr.f32.gmra.mrb[0].mxu0 %v2384
    %v2551 = vpop.f32.mrb[0].mxu0
    %v2552 = vadd.f32 %v2371, %v2551
    %v2553 = vpop.f32.mrb[0].mxu0
    %2554 = vmatprep.mubr.f32.mxu0 0.0
    %2555 = vmatmul.mubr.f32.gmra.mrb[0].mxu0 %v2387
    %v2556 = vpop.f32.mrb[0].mxu0
    %v2557 = vadd.f32 %v2371, %v2556
    %v2558 = vpop.f32.mrb[0].mxu0
    %2559 = vmatprep.mubr.f32.mxu0 0.0
    %2560 = vmatmul.mubr.f32.gmra.mrb[0].mxu0 %v2390
    %v2561 = vpop.f32.mrb[0].mxu0
    %v2562 = vadd.f32 %v2371, %v2561
    %v2563 = vpop.f32.mrb[0].mxu0
    %2564 = vmatprep.mubr.f32.mxu0 0.0
    %2565 = vmatmul.mubr.f32.gmra.mrb[0].mxu0 %v2393
    %v2566 = vpop.f32.mrb[0].mxu0
    %v2567 = vadd.f32 %v2371, %v2566
    %v2568 = vpop.f32.mrb[0].mxu0
    %2569 = vmatprep.mubr.f32.mxu0 0.0
    %2570 = vmatmul.mubr.f32.gmra.mrb[0].mxu0 %v2396
    %v2571 = vpop.f32.mrb[0].mxu0
    %v2572 = vadd.f32 %v2371, %v2571
    %v2573 = vpop.f32.mrb[0].mxu0
    %2574 = vmatprep.mubr.f32.mxu0 0.0
    %2575 = vmatmul.mubr.f32.gmra.mrb[0].mxu0 %v2399
    %v2576 = vpop.f32.mrb[0].mxu0
    %v2577 = vadd.f32 %v2371, %v2576
    %v2578 = vpop.f32.mrb[0].mxu0
    %2579 = vmatprep.mubr.f32.mxu0 0.0
    %2580 = vmatmul.mubr.f32.gmra.mrb[0].mxu0 %v2402
    %v2581 = vpop.f32.mrb[0].mxu0
    %v2582 = vadd.f32 %v2371, %v2581
    %v2583 = vpop.f32.mrb[0].mxu0
    %2584 = vmatprep.mubr.f32.mxu0 0.0
    %2585 = vmatmul.mubr.f32.gmra.mrb[0].mxu0 %v2405
    %v2586 = vpop.f32.mrb[0].mxu0
    %v2587 = vadd.f32 %v2371, %v2586
    %v2588 = vpop.f32.mrb[0].mxu0
    %2589 = vmatprep.mubr.f32.mxu0 0.0
    %2590 = vmatmul.mubr.f32.gmra.mrb[0].mxu0 %v2408
    %v2591 = vpop.f32.mrb[0].mxu0
    %v2592 = vadd.f32 %v2371, %v2591
    %v2593 = vpop.f32.mrb[0].mxu0
    %2594 = vmatprep.mubr.f32.mxu0 0.0
    %2595 = vmatmul.mubr.f32.gmra.mrb[0].mxu0 %v2411
    %v2596 = vpop.f32.mrb[0].mxu0
    %v2597 = vadd.f32 %v2371, %v2596
    %v2598 = vpop.f32.mrb[0].mxu0
    %2599 = vmatprep.mubr.f32.mxu0 0.0
    %2600 = vmatmul.mubr.f32.gmra.mrb[0].mxu0 %v2414
    %v2601 = vpop.f32.mrb[0].mxu0
    %v2602 = vadd.f32 %v2371, %v2601
    %v2603 = vpop.f32.mrb[0].mxu0
    %2604 = vmatprep.mubr.f32.mxu0 0.0
    %2605 = vmatmul.mubr.f32.gmra.mrb[0].mxu0 %v2417
    %v2606 = vpop.f32.mrb[0].mxu0
    %v2607 = vadd.f32 %v2371, %v2606
    %v2608 = vpop.f32.mrb[0].mxu0
    %2609 = vmatprep.mubr.f32.mxu0 0.0
    %2610 = vmatmul.mubr.f32.gmra.mrb[0].mxu0 %v2420
    %v2611 = vpop.f32.mrb[0].mxu0
    %v2612 = vadd.f32 %v2371, %v2611
    %v2613 = vpop.f32.mrb[0].mxu0
    %2614 = vmatprep.mubr.f32.mxu0 0.0
    %2615 = vmatmul.mubr.f32.gmra.mrb[0].mxu0 %v2423
    %v2616 = vpop.f32.mrb[0].mxu0
    %v2617 = vadd.f32 %v2371, %v2616
    %v2618 = vpop.f32.mrb[0].mxu0
    %2619 = vmatprep.mubr.f32.mxu0 0.0
    %2620 = vmatmul.mubr.f32.gmra.mrb[0].mxu0 %v2426
    %v2621 = vpop.f32.mrb[0].mxu0
    %v2622 = vadd.f32 %v2371, %v2621
    %v2623 = vpop.f32.mrb[0].mxu0
    %2624 = vmatprep.mubr.f32.mxu0 0.0
    %2625 = vmatmul.mubr.f32.gmra.mrb[0].mxu0 %v2429
    %v2626 = vpop.f32.mrb[0].mxu0
    %v2627 = vadd.f32 %v2371, %v2626
    %v2628 = vpop.f32.mrb[0].mxu0
    %2629 = vmatprep.mubr.f32.mxu0 0.0
    %2630 = vmatmul.mubr.f32.gmra.mrb[0].mxu0 %v2432
    %v2631 = vpop.f32.mrb[0].mxu0
    %v2632 = vadd.f32 %v2371, %v2631
    %v2633 = vpop.f32.mrb[0].mxu0
    %2634 = vmatprep.mubr.f32.mxu0 0.0
    %2635 = vmatmul.mubr.f32.gmra.mrb[0].mxu0 %v2435
    %v2636 = vpop.f32.mrb[0].mxu0
    %v2637 = vadd.f32 %v2371, %v2636
    %v2638 = vpop.f32.mrb[0].mxu0
    %2639 = vmatprep.mubr.f32.mxu0 0.0
    %2640 = vmatmul.mubr.f32.gmra.mrb[0].mxu0 %v2438
    %v2641 = vpop.f32.mrb[0].mxu0
    %v2642 = vadd.f32 %v2371, %v2641
    %v2643 = vpop.f32.mrb[0].mxu0
    %2644 = vmatprep.mubr.f32.mxu0 0.0
    %2645 = vmatmul.mubr.f32.gmra.mrb[0].mxu0 %v2441
    %v2646 = vpop.f32.mrb[0].mxu0
    %v2647 = vadd.f32 %v2371, %v2646
    %v2648 = vpop.f32.mrb[0].mxu0
    %2649 = vmatprep.mubr.f32.mxu0 0.0
    %2650 = vmatmul.mubr.f32.gmra.mrb[0].mxu0 %v2444
    %v2651 = vpop.f32.mrb[0].mxu0
    %v2652 = vadd.f32 %v2371, %v2651
    %v2653 = vpop.f32.mrb[0].mxu0
    %2654 = vmatprep.mubr.f32.mxu0 0.0
    %2655 = vmatmul.mubr.f32.gmra.mrb[0].mxu0 %v2447
    %v2656 = vpop.f32.mrb[0].mxu0
    %v2657 = vadd.f32 %v2371, %v2656
    %v2658 = vpop.f32.mrb[0].mxu0
    %2659 = vmatprep.mubr.f32.mxu0 0.0
    %2660 = vmatmul.mubr.f32.gmra.mrb[0].mxu0 %v2450
    %v2661 = vpop.f32.mrb[0].mxu0
    %v2662 = vadd.f32 %v2371, %v2661
    %v2663 = vpop.f32.mrb[0].mxu0
    %2664 = vmatprep.mubr.f32.mxu0 0.0
    %2665 = vmatmul.mubr.f32.gmra.mrb[0].mxu0 %v2453
    %v2666 = vpop.f32.mrb[0].mxu0
    %v2667 = vadd.f32 %v2371, %v2666
    %v2668 = vpop.f32.mrb[0].mxu0
    %2669 = vmatprep.mubr.f32.mxu0 0.0
    %2670 = vmatmul.mubr.f32.gmra.mrb[0].mxu0 %v2456
    %v2671 = vpop.f32.mrb[0].mxu0
    %v2672 = vadd.f32 %v2371, %v2671
    %v2673 = vpop.f32.mrb[0].mxu0
    %2674 = vmatprep.mubr.f32.mxu0 0.0
    %2675 = vmatmul.mubr.f32.gmra.mrb[0].mxu0 %v2459
    %v2676 = vpop.f32.mrb[0].mxu0
    %v2677 = vadd.f32 %v2371, %v2676
    %v2678 = vpop.f32.mrb[0].mxu0
    %2679 = vmatprep.mubr.f32.mxu0 0.0
    %2680 = vmatmul.mubr.f32.gmra.mrb[0].mxu0 %v2462
    %v2681 = vpop.f32.mrb[0].mxu0
    %v2682 = vadd.f32 %v2371, %v2681
    %v2683 = vpop.f32.mrb[0].mxu0
    %2684 = vmatprep.mubr.f32.mxu0 0.0
    %2685 = vmatmul.mubr.f32.gmra.mrb[0].mxu0 %v2465
    %v2686 = vpop.f32.mrb[0].mxu0
    %v2687 = vadd.f32 %v2371, %v2686
    %v2688 = vpop.f32.mrb[0].mxu0
    %2689 = vmatprep.mubr.f32.mxu0 0.0
    %2690 = vmatmul.mubr.f32.gmra.mrb[0].mxu0 %v2468
    %v2691 = vpop.f32.mrb[0].mxu0
    %v2692 = vadd.f32 %v2371, %v2691
    %v2693 = vpop.f32.mrb[0].mxu0
    %2694 = vdwg.mxu0
    %2695 = vst [vmem:[#allocation8] sm:$0xff] %v2537
    %2696 = vst [vmem:[#allocation8 + $0x8] sm:$0xff] %v2542
    %2697 = vst [vmem:[#allocation8 + $0x10] sm:$0xff] %v2547
    %2698 = vst [vmem:[#allocation8 + $0x18] sm:$0xff] %v2552
    %2699 = vst [vmem:[#allocation8 + $0x20] sm:$0xff] %v2557
    %2700 = vst [vmem:[#allocation8 + $0x28] sm:$0xff] %v2562
    %2701 = vst [vmem:[#allocation8 + $0x30] sm:$0xff] %v2567
    %2702 = vst [vmem:[#allocation8 + $0x38] sm:$0xff] %v2572
    %2703 = vst [vmem:[#allocation8 + $0x40] sm:$0xff] %v2577
    %2704 = vst [vmem:[#allocation8 + $0x48] sm:$0xff] %v2582
    %2705 = vst [vmem:[#allocation8 + $0x50] sm:$0xff] %v2587
    %2706 = vst [vmem:[#allocation8 + $0x58] sm:$0xff] %v2592
    %2707 = vst [vmem:[#allocation8 + $0x60] sm:$0xff] %v2597
    %2708 = vst [vmem:[#allocation8 + $0x68] sm:$0xff] %v2602
    %2709 = vst [vmem:[#allocation8 + $0x70] sm:$0xff] %v2607
    %2710 = vst [vmem:[#allocation8 + $0x78] sm:$0xff] %v2612
    %2711 = vst [vmem:[#allocation8 + $0x80] sm:$0xff] %v2617
    %2712 = vst [vmem:[#allocation8 + $0x88] sm:$0xff] %v2622
    %2713 = vst [vmem:[#allocation8 + $0x90] sm:$0xff] %v2627
    %2714 = vst [vmem:[#allocation8 + $0x98] sm:$0xff] %v2632
    %2715 = vst [vmem:[#allocation8 + $0xa0] sm:$0xff] %v2637
    %2716 = vst [vmem:[#allocation8 + $0xa8] sm:$0xff] %v2642
    %2717 = vst [vmem:[#allocation8 + $0xb0] sm:$0xff] %v2647
    %2718 = vst [vmem:[#allocation8 + $0xb8] sm:$0xff] %v2652
    %2719 = vst [vmem:[#allocation8 + $0xc0] sm:$0xff] %v2657
    %2720 = vst [vmem:[#allocation8 + $0xc8] sm:$0xff] %v2662
    %2721 = vst [vmem:[#allocation8 + $0xd0] sm:$0xff] %v2667
    %2722 = vst [vmem:[#allocation8 + $0xd8] sm:$0xff] %v2672
    %2723 = vst [vmem:[#allocation8 + $0xe0] sm:$0xff] %v2677
    %2724 = vst [vmem:[#allocation8 + $0xe8] sm:$0xff] %v2682
    %2725 = vst [vmem:[#allocation8 + $0xf0] sm:$0xff] %v2687
    %2726 = vst [vmem:[#allocation8 + $0xf8] sm:$0xff] %v2692
    // Predicated region
    $region50: #{tpu_custom_call.1} parent=1 // pred_check
      _
    $region51: #{tpu_custom_call.1} parent=1 // pred_check_branch
      %2728 = sbr.rel (0) target = $region53
    $region52: #{tpu_custom_call.1} parent=1 // pred_region
      %s2730 = ssub.s32 4096, 4096
      %2731 = vsyncadd [#allocation4], %s2730
      %s2732 = sshll.u32 [#allocation8], 4
      %s2733 = int_to_ptr.vmem [resolvable:$true] %s2732
      %2738 = dma.vmem_to_hbm [thread:$0]  %s2733, 4096, %s9, [#allocation4], 128, 128, 8
    $region53: #{tpu_custom_call.1} parent=1 // pred_fallthru
      _
    // Predicated region
    $region54: #{tpu_custom_call.1} parent=1 // pred_check
      _
    $region55: #{tpu_custom_call.1} parent=1 // pred_check_branch
      %2740 = sbr.rel (0) target = $region57
    $region56: #{tpu_custom_call.1} parent=1 // pred_region
      %2741 = dma.done [#allocation4], 4096
    $region57: #{tpu_custom_call.1} parent=1 // pred_fallthru
      _
    %2742 = vsyncpa [#allocation3], 1
    %2743 = vsyncpa [#allocation6], 1
    %2744 = vsyncpa [#allocation4], 1

</llo_original>
